<compile_context>
chip_gen: v7x
topology: tpu7x:2x2x1
jax: 0.10.0
libtpu: 0.0.40
codegen_flags: <defaults>
</compile_context>

<pallas_src>
import functools

import jax
import jax.numpy as jnp
from jax import lax
from jax.experimental import pallas as pl
from jax.experimental.pallas import tpu as pltpu


def _embed_dropout_kernel(ids_ref, table_ref, out_ref, *, p_dropout, training, seed):
    # ids_ref:   (T, 1)  int32  token ids for this block
    # table_ref: (Vp, D) f32    full (padded) embedding table, VMEM-resident
    # out_ref:   (T, D)  f32    output slab
    ids = ids_ref[...]                                   # (T, 1)
    T = ids.shape[0]
    Vp, D = table_ref.shape

    # Gather T rows via one-hot matmul on the MXU (small-vocab path).
    vocab_iota = lax.broadcasted_iota(jnp.int32, (T, Vp), 1)
    onehot = (ids == vocab_iota).astype(jnp.float32)     # (T, Vp)
    emb = jnp.dot(onehot, table_ref[...],
                  preferred_element_type=jnp.float32,
                  precision=lax.Precision.HIGHEST)       # (T, D)

    if training and p_dropout >= 1.0:
        # Degenerate case: drop everything (avoids uint32 threshold overflow).
        emb = jnp.zeros_like(emb)
    elif training and p_dropout > 0.0:
        # Stateless counter-based PRNG: per-element global counter -> 32-bit hash.
        blk = pl.program_id(0).astype(jnp.uint32)
        row = lax.broadcasted_iota(jnp.int32, (T, D), 0).astype(jnp.uint32)
        col = lax.broadcasted_iota(jnp.int32, (T, D), 1).astype(jnp.uint32)
        ctr = (jnp.uint32(seed)
               + (blk * jnp.uint32(T) + row) * jnp.uint32(D)
               + col)
        # lowbias32-style integer hash (xor-shift-multiply), all uint32 VPU ops.
        x = ctr
        x = x ^ (x >> jnp.uint32(16))
        x = x * jnp.uint32(0x7FEB352D)
        x = x ^ (x >> jnp.uint32(15))
        x = x * jnp.uint32(0x846CA68B)
        x = x ^ (x >> jnp.uint32(16))
        # Use the top 24 bits (nonnegative in int32) for the keep/drop decision.
        r24 = (x >> jnp.uint32(8)).astype(jnp.int32)
        thresh = jnp.int32(min(int(p_dropout * (1 << 24)), (1 << 24) - 1))
        inv_keep = jnp.float32(1.0 / (1.0 - p_dropout))
        # Fold the 1/(1-p) scale into the mask: one select + one multiply.
        keep_scale = jnp.where(r24 >= thresh, inv_keep, jnp.float32(0.0))
        emb = emb * keep_scale

    out_ref[...] = emb.astype(out_ref.dtype)


def word_embedding_token_embedding(input_ids, embedding_table, *,
                                   p_dropout=0.2, training=True, seed=1234,
                                   block_tokens=256):
    """input_ids: (B, S) int; embedding_table: (V+1, D) float32 (row 0 = zeros).

    Returns (B, S, D) float32 token embeddings with (optional) inverted dropout.
    """
    B, S = input_ids.shape
    V1, D = embedding_table.shape
    N = B * S

    T = int(block_tokens)
    n_blocks = pl.cdiv(N, T)
    N_pad = n_blocks * T
    Vp = ((V1 + 127) // 128) * 128          # pad vocab rows to a lane multiple

    ids = input_ids.reshape(N).astype(jnp.int32)
    if N_pad > N:
        ids = jnp.concatenate([ids, jnp.zeros((N_pad - N,), jnp.int32)])
    ids_col = ids.reshape(N_pad, 1)

    table = embedding_table.astype(jnp.float32)
    if Vp > V1:
        table = jnp.concatenate(
            [table, jnp.zeros((Vp - V1, D), jnp.float32)], axis=0)

    kernel = functools.partial(
        _embed_dropout_kernel,
        p_dropout=float(p_dropout),
        training=bool(training),
        seed=int(seed) & 0xFFFFFFFF,
    )

    out_flat = pl.pallas_call(
        kernel,
        out_shape=jax.ShapeDtypeStruct((N_pad, D), jnp.float32),
        grid=(n_blocks,),
        in_specs=[
            # Token ids for this block (column vector: T on the sublane axis).
            pl.BlockSpec((T, 1), lambda b: (b, 0)),
            # Full table, constant index_map -> fetched once, resident across grid.
            pl.BlockSpec((Vp, D), lambda b: (0, 0)),
        ],
        out_specs=pl.BlockSpec((T, D), lambda b: (b, 0)),
        compiler_params=pltpu.CompilerParams(
            dimension_semantics=("parallel",),
        ),
    )(ids_col, table)

    return out_flat[:N].reshape(B, S, D)


if __name__ == "__main__":
    key = jax.random.PRNGKey(0)
    k_w, k_ids = jax.random.split(key)

    # Synthetic "pretrained" embedding matrix (stands in for np.load(embedding_path)).
    V = 50           # vocabulary rows in the loaded file
    D = 128          # embedding dim (lane-friendly)
    B, S = 2, 8
    p = 0.2

    pretrained = jax.random.normal(k_w, (V, D), dtype=jnp.float32)
    # Prepend an all-zero padding row, as in _init_embedding.
    embedding_table = jnp.concatenate(
        [jnp.zeros((1, D), dtype=jnp.float32), pretrained], axis=0)   # (V+1, D)

    # Token ids in [0, V]; 0 is the padding row.
    input_ids = jax.random.randint(k_ids, (B, S), minval=0, maxval=V + 1,
                                   dtype=jnp.int32)

    out = word_embedding_token_embedding(
        input_ids, embedding_table, p_dropout=p, training=True, seed=1234)
    out = jax.block_until_ready(out)

    # Eval-mode path == pure gather.
    out_eval = word_embedding_token_embedding(
        input_ids, embedding_table, p_dropout=p, training=False)
    out_eval = jax.block_until_ready(out_eval)

    ref = embedding_table[input_ids]          # plain-JAX reference gather
    assert out.shape == (B, S, D) and out.dtype == jnp.float32
    assert jnp.allclose(out_eval, ref, rtol=1e-5, atol=1e-5)

    # Training-mode outputs are either 0 or 1/(1-p)-scaled copies of the gather.
    scaled = ref / (1.0 - p)
    ok = jnp.isclose(out, 0.0, atol=1e-6) | jnp.isclose(out, scaled,
                                                        rtol=1e-4, atol=1e-5)
    assert bool(jnp.all(ok))

    print("KERNEL_OK")
</pallas_src>

<mosaic_0001>
module attributes {stable_mosaic.version = 11 : i64} {
  func.func @_embed_dropout_kernel(%arg0: i32, %arg1: memref<256x1xi32, #tpu.memory_space<vmem>>, %arg2: memref<128x128xf32, #tpu.memory_space<vmem>>, %arg3: memref<256x128xf32, #tpu.memory_space<vmem>>) attributes {dimension_semantics = [#tpu.dimension_semantics<parallel>], iteration_bounds = array<i64: 1>, scalar_prefetch = 0 : i64, scratch_operands = 0 : i64, tpu.core_type = #tpu.core_type<tc>, window_params = [{transform_indices = @transform_0, window_bounds = array<i64: 256, 1>}, {pipeline_mode = #tpu.pipeline_mode<synchronous>, transform_indices = @transform_1, window_bounds = array<i64: 128, 128>}, {transform_indices = @transform_2, window_bounds = array<i64: 256, 128>}]} {
    %c0 = arith.constant 0 : index
    %c0_0 = arith.constant 0 : index
    %0 = vector.load %arg1[%c0, %c0_0] : memref<256x1xi32, #tpu.memory_space<vmem>>, vector<256x1xi32>
    %1 = tpu.iota {dimensions = array<i32: 1>} : vector<256x128xi32>
    %2 = vector.broadcast %0 : vector<256x1xi32> to vector<256x128xi32>
    %3 = arith.cmpi eq, %2, %1 : vector<256x128xi32>
    %4 = arith.extui %3 : vector<256x128xi1> to vector<256x128xi32>
    %5 = arith.sitofp %4 : vector<256x128xi32> to vector<256x128xf32>
    %c0_1 = arith.constant 0 : index
    %c0_2 = arith.constant 0 : index
    %6 = vector.load %arg2[%c0_1, %c0_2] : memref<128x128xf32, #tpu.memory_space<vmem>>, vector<128x128xf32>
    %cst = arith.constant dense<0.000000e+00> : vector<256x128xf32>
    %7 = tpu.matmul %5, %6, %cst {dimension_numbers = #tpu.dot_dimension_numbers<[1], [0], [0], [1], [0, 0, 1, 1], [], []>, precision = #tpu.contract_precision<fp32>} : vector<256x128xf32>, vector<128x128xf32>, vector<256x128xf32> -> vector<256x128xf32>
    %8 = tpu.iota {dimensions = array<i32: 0>} : vector<256x128xi32>
    %9 = tpu.iota {dimensions = array<i32: 1>} : vector<256x128xi32>
    %c256_i32 = arith.constant 256 : i32
    %10 = arith.muli %arg0, %c256_i32 : i32
    %11 = vector.broadcast %10 : i32 to vector<256x128xi32>
    %12 = arith.addi %11, %8 : vector<256x128xi32>
    %c128_i32 = arith.constant 128 : i32
    %13 = vector.broadcast %c128_i32 : i32 to vector<256x128xi32>
    %14 = arith.muli %12, %13 : vector<256x128xi32>
    %c1234_i32 = arith.constant 1234 : i32
    %15 = vector.broadcast %c1234_i32 : i32 to vector<256x128xi32>
    %16 = arith.addi %15, %14 : vector<256x128xi32>
    %17 = arith.addi %16, %9 : vector<256x128xi32>
    %c16_i32 = arith.constant 16 : i32
    %18 = vector.broadcast %c16_i32 : i32 to vector<256x128xi32>
    %19 = arith.shrui %17, %18 : vector<256x128xi32>
    %20 = arith.xori %17, %19 : vector<256x128xi32>
    %c2146121005_i32 = arith.constant 2146121005 : i32
    %21 = vector.broadcast %c2146121005_i32 : i32 to vector<256x128xi32>
    %22 = arith.muli %20, %21 : vector<256x128xi32>
    %c15_i32 = arith.constant 15 : i32
    %23 = vector.broadcast %c15_i32 : i32 to vector<256x128xi32>
    %24 = arith.shrui %22, %23 : vector<256x128xi32>
    %25 = arith.xori %22, %24 : vector<256x128xi32>
    %c-2073254261_i32 = arith.constant -2073254261 : i32
    %26 = vector.broadcast %c-2073254261_i32 : i32 to vector<256x128xi32>
    %27 = arith.muli %25, %26 : vector<256x128xi32>
    %c16_i32_3 = arith.constant 16 : i32
    %28 = vector.broadcast %c16_i32_3 : i32 to vector<256x128xi32>
    %29 = arith.shrui %27, %28 : vector<256x128xi32>
    %30 = arith.xori %27, %29 : vector<256x128xi32>
    %c8_i32 = arith.constant 8 : i32
    %31 = vector.broadcast %c8_i32 : i32 to vector<256x128xi32>
    %32 = arith.shrui %30, %31 : vector<256x128xi32>
    %c3355443_i32 = arith.constant 3355443 : i32
    %33 = vector.broadcast %c3355443_i32 : i32 to vector<256x128xi32>
    %34 = arith.cmpi sge, %32, %33 : vector<256x128xi32>
    %cst_4 = arith.constant 1.250000e+00 : f32
    %cst_5 = arith.constant 0.000000e+00 : f32
    %35 = vector.broadcast %cst_4 : f32 to vector<256x128xf32>
    %36 = vector.broadcast %cst_5 : f32 to vector<256x128xf32>
    %37 = arith.select %34, %35, %36 : vector<256x128xi1>, vector<256x128xf32>
    %38 = arith.mulf %7, %37 : vector<256x128xf32>
    %c0_6 = arith.constant 0 : index
    %c0_7 = arith.constant 0 : index
    %39 = vector.load %arg3[%c0_6, %c0_7] : memref<256x128xf32, #tpu.memory_space<vmem>>, vector<256x128xf32>
    tpu.vector_store %arg3[%c0_6, %c0_7], %38 {strides = array<i32>} : memref<256x128xf32, #tpu.memory_space<vmem>>, vector<256x128xf32>,
    return
  }
  func.func @transform_0(%arg0: i32) -> (i32, i32) {
    %c0_i32 = arith.constant 0 : i32
    %c0_i32_0 = arith.constant 0 : i32
    return %arg0, %c0_i32 : i32, i32
  }
  func.func @transform_1(%arg0: i32) -> (i32, i32) {
    %c0_i32 = arith.constant 0 : i32
    %c0_i32_0 = arith.constant 0 : i32
    %c0_i32_1 = arith.constant 0 : i32
    return %c0_i32, %c0_i32_0 : i32, i32
  }
  func.func @transform_2(%arg0: i32) -> (i32, i32) {
    %c0_i32 = arith.constant 0 : i32
    %c0_i32_0 = arith.constant 0 : i32
    return %arg0, %c0_i32 : i32, i32
  }
}

</mosaic_0001>

<llo_original>
// kernel: tpu_custom_call.1
$region0: #{tpu_custom_call.1}
  #allocation0 [shape = 'u32[]', space=smem, size = 0x4, offset = 0x4, fixed_abs, tag = 'smem constant byte address 0x4 - core index']
  #allocation1 [shape = 'u32[144,128]{1,0:T(1,128)}', space=vmem, size = 0x12000, scoped, tag = 'internal scratch']
  %s0 = inlined_call_operand.vmem [shape: s32[256,1], index: 0, kind: input, shape index: {}]
  %s1 = inlined_call_operand.vmem [shape: f32[128,128], index: 1, kind: input, shape index: {}]
  %s2 = inlined_call_operand.hbm [shape: f32[256,128], index: 2, kind: output, shape index: {}]
  %s3 = sld [smem:[#allocation0]]
  $region18: #{tpu_custom_call.1} parent=0
    _
  %s5 = ssub.s32 1, %s3
  %s6 = scalar_select 0, %s5, %s3
  $region1: #{tpu_custom_call.1} parent=0
    #allocation2 [shape = 'u8[131072]{0}', space=vmem, size = 0x20000, scoped, tag = 'output window, operand 0, single buffered']
    #allocation3 [shape = 's32[1]{0}', space=sflag, size = 0x4, scoped, tag = 'scoped memory for tpu_custom_call.1']
    %7 = vsyncpa [#allocation3], 0
    // Predicated region
    $region2: #{tpu_custom_call.1} parent=1 // pred_check
      _
    $region3: #{tpu_custom_call.1} parent=1 // pred_check_branch
      %9 = sbr.rel (0) target = $region5
    $region4: #{tpu_custom_call.1} parent=1 // pred_region
      _
    $region5: #{tpu_custom_call.1} parent=1 // pred_fallthru
      _
    // Predicated region
    $region6: #{tpu_custom_call.1} parent=1 // pred_check
      _
    $region7: #{tpu_custom_call.1} parent=1 // pred_check_branch
      %11 = sbr.rel (0) target = $region9
    $region8: #{tpu_custom_call.1} parent=1 // pred_region
      _
    $region9: #{tpu_custom_call.1} parent=1 // pred_fallthru
      _
    %v12 = vld [vmem:[%s0] sm:$0xff]
    %v13 = vld [vmem:[%s0 + $0x8] sm:$0xff]
    %v14 = vld [vmem:[%s0 + $0x10] sm:$0xff]
    %v15 = vld [vmem:[%s0 + $0x18] sm:$0xff]
    %v16 = vld [vmem:[%s0 + $0x20] sm:$0xff]
    %v17 = vld [vmem:[%s0 + $0x28] sm:$0xff]
    %v18 = vld [vmem:[%s0 + $0x30] sm:$0xff]
    %v19 = vld [vmem:[%s0 + $0x38] sm:$0xff]
    %v20 = vld [vmem:[%s0 + $0x40] sm:$0xff]
    %v21 = vld [vmem:[%s0 + $0x48] sm:$0xff]
    %v22 = vld [vmem:[%s0 + $0x50] sm:$0xff]
    %v23 = vld [vmem:[%s0 + $0x58] sm:$0xff]
    %v24 = vld [vmem:[%s0 + $0x60] sm:$0xff]
    %v25 = vld [vmem:[%s0 + $0x68] sm:$0xff]
    %v26 = vld [vmem:[%s0 + $0x70] sm:$0xff]
    %v27 = vld [vmem:[%s0 + $0x78] sm:$0xff]
    %v28 = vld [vmem:[%s0 + $0x80] sm:$0xff]
    %v29 = vld [vmem:[%s0 + $0x88] sm:$0xff]
    %v30 = vld [vmem:[%s0 + $0x90] sm:$0xff]
    %v31 = vld [vmem:[%s0 + $0x98] sm:$0xff]
    %v32 = vld [vmem:[%s0 + $0xa0] sm:$0xff]
    %v33 = vld [vmem:[%s0 + $0xa8] sm:$0xff]
    %v34 = vld [vmem:[%s0 + $0xb0] sm:$0xff]
    %v35 = vld [vmem:[%s0 + $0xb8] sm:$0xff]
    %v36 = vld [vmem:[%s0 + $0xc0] sm:$0xff]
    %v37 = vld [vmem:[%s0 + $0xc8] sm:$0xff]
    %v38 = vld [vmem:[%s0 + $0xd0] sm:$0xff]
    %v39 = vld [vmem:[%s0 + $0xd8] sm:$0xff]
    %v40 = vld [vmem:[%s0 + $0xe0] sm:$0xff]
    %v41 = vld [vmem:[%s0 + $0xe8] sm:$0xff]
    %v42 = vld [vmem:[%s0 + $0xf0] sm:$0xff]
    %v43 = vld [vmem:[%s0 + $0xf8] sm:$0xff]
    %v44 = vlaneseq
    %v45 = vand.u32 %v44, 127
    %46 = vset.pattern.permute.xlu0 0
    %47 = vperm.xlu0 %46, %v12
    %v48 = vpop.permute.xlu0 %47
    %49 = vset.pattern.permute.xlu0 0
    %50 = vperm.xlu0 %49, %v13
    %v51 = vpop.permute.xlu0 %50
    %52 = vset.pattern.permute.xlu0 0
    %53 = vperm.xlu0 %52, %v14
    %v54 = vpop.permute.xlu0 %53
    %55 = vset.pattern.permute.xlu0 0
    %56 = vperm.xlu0 %55, %v15
    %v57 = vpop.permute.xlu0 %56
    %58 = vset.pattern.permute.xlu0 0
    %59 = vperm.xlu0 %58, %v16
    %v60 = vpop.permute.xlu0 %59
    %61 = vset.pattern.permute.xlu0 0
    %62 = vperm.xlu0 %61, %v17
    %v63 = vpop.permute.xlu0 %62
    %64 = vset.pattern.permute.xlu0 0
    %65 = vperm.xlu0 %64, %v18
    %v66 = vpop.permute.xlu0 %65
    %67 = vset.pattern.permute.xlu0 0
    %68 = vperm.xlu0 %67, %v19
    %v69 = vpop.permute.xlu0 %68
    %70 = vset.pattern.permute.xlu0 0
    %71 = vperm.xlu0 %70, %v20
    %v72 = vpop.permute.xlu0 %71
    %73 = vset.pattern.permute.xlu0 0
    %74 = vperm.xlu0 %73, %v21
    %v75 = vpop.permute.xlu0 %74
    %76 = vset.pattern.permute.xlu0 0
    %77 = vperm.xlu0 %76, %v22
    %v78 = vpop.permute.xlu0 %77
    %79 = vset.pattern.permute.xlu0 0
    %80 = vperm.xlu0 %79, %v23
    %v81 = vpop.permute.xlu0 %80
    %82 = vset.pattern.permute.xlu0 0
    %83 = vperm.xlu0 %82, %v24
    %v84 = vpop.permute.xlu0 %83
    %85 = vset.pattern.permute.xlu0 0
    %86 = vperm.xlu0 %85, %v25
    %v87 = vpop.permute.xlu0 %86
    %88 = vset.pattern.permute.xlu0 0
    %89 = vperm.xlu0 %88, %v26
    %v90 = vpop.permute.xlu0 %89
    %91 = vset.pattern.permute.xlu0 0
    %92 = vperm.xlu0 %91, %v27
    %v93 = vpop.permute.xlu0 %92
    %94 = vset.pattern.permute.xlu0 0
    %95 = vperm.xlu0 %94, %v28
    %v96 = vpop.permute.xlu0 %95
    %97 = vset.pattern.permute.xlu0 0
    %98 = vperm.xlu0 %97, %v29
    %v99 = vpop.permute.xlu0 %98
    %100 = vset.pattern.permute.xlu0 0
    %101 = vperm.xlu0 %100, %v30
    %v102 = vpop.permute.xlu0 %101
    %103 = vset.pattern.permute.xlu0 0
    %104 = vperm.xlu0 %103, %v31
    %v105 = vpop.permute.xlu0 %104
    %106 = vset.pattern.permute.xlu0 0
    %107 = vperm.xlu0 %106, %v32
    %v108 = vpop.permute.xlu0 %107
    %109 = vset.pattern.permute.xlu0 0
    %110 = vperm.xlu0 %109, %v33
    %v111 = vpop.permute.xlu0 %110
    %112 = vset.pattern.permute.xlu0 0
    %113 = vperm.xlu0 %112, %v34
    %v114 = vpop.permute.xlu0 %113
    %115 = vset.pattern.permute.xlu0 0
    %116 = vperm.xlu0 %115, %v35
    %v117 = vpop.permute.xlu0 %116
    %118 = vset.pattern.permute.xlu0 0
    %119 = vperm.xlu0 %118, %v36
    %v120 = vpop.permute.xlu0 %119
    %121 = vset.pattern.permute.xlu0 0
    %122 = vperm.xlu0 %121, %v37
    %v123 = vpop.permute.xlu0 %122
    %124 = vset.pattern.permute.xlu0 0
    %125 = vperm.xlu0 %124, %v38
    %v126 = vpop.permute.xlu0 %125
    %127 = vset.pattern.permute.xlu0 0
    %128 = vperm.xlu0 %127, %v39
    %v129 = vpop.permute.xlu0 %128
    %130 = vset.pattern.permute.xlu0 0
    %131 = vperm.xlu0 %130, %v40
    %v132 = vpop.permute.xlu0 %131
    %133 = vset.pattern.permute.xlu0 0
    %134 = vperm.xlu0 %133, %v41
    %v135 = vpop.permute.xlu0 %134
    %136 = vset.pattern.permute.xlu0 0
    %137 = vperm.xlu0 %136, %v42
    %v138 = vpop.permute.xlu0 %137
    %139 = vset.pattern.permute.xlu0 0
    %140 = vperm.xlu0 %139, %v43
    %v141 = vpop.permute.xlu0 %140
    %vm142 = vcmp.eq.s32.totalorder %v48, %v45
    %vm143 = vcmp.eq.s32.totalorder %v51, %v45
    %vm144 = vcmp.eq.s32.totalorder %v54, %v45
    %vm145 = vcmp.eq.s32.totalorder %v57, %v45
    %vm146 = vcmp.eq.s32.totalorder %v60, %v45
    %vm147 = vcmp.eq.s32.totalorder %v63, %v45
    %vm148 = vcmp.eq.s32.totalorder %v66, %v45
    %vm149 = vcmp.eq.s32.totalorder %v69, %v45
    %vm150 = vcmp.eq.s32.totalorder %v72, %v45
    %vm151 = vcmp.eq.s32.totalorder %v75, %v45
    %vm152 = vcmp.eq.s32.totalorder %v78, %v45
    %vm153 = vcmp.eq.s32.totalorder %v81, %v45
    %vm154 = vcmp.eq.s32.totalorder %v84, %v45
    %vm155 = vcmp.eq.s32.totalorder %v87, %v45
    %vm156 = vcmp.eq.s32.totalorder %v90, %v45
    %vm157 = vcmp.eq.s32.totalorder %v93, %v45
    %vm158 = vcmp.eq.s32.totalorder %v96, %v45
    %vm159 = vcmp.eq.s32.totalorder %v99, %v45
    %vm160 = vcmp.eq.s32.totalorder %v102, %v45
    %vm161 = vcmp.eq.s32.totalorder %v105, %v45
    %vm162 = vcmp.eq.s32.totalorder %v108, %v45
    %vm163 = vcmp.eq.s32.totalorder %v111, %v45
    %vm164 = vcmp.eq.s32.totalorder %v114, %v45
    %vm165 = vcmp.eq.s32.totalorder %v117, %v45
    %vm166 = vcmp.eq.s32.totalorder %v120, %v45
    %vm167 = vcmp.eq.s32.totalorder %v123, %v45
    %vm168 = vcmp.eq.s32.totalorder %v126, %v45
    %vm169 = vcmp.eq.s32.totalorder %v129, %v45
    %vm170 = vcmp.eq.s32.totalorder %v132, %v45
    %vm171 = vcmp.eq.s32.totalorder %v135, %v45
    %vm172 = vcmp.eq.s32.totalorder %v138, %v45
    %vm173 = vcmp.eq.s32.totalorder %v141, %v45
    %v174 = vsel %vm142, 1, 0
    %v175 = vsel %vm143, 1, 0
    %v176 = vsel %vm144, 1, 0
    %v177 = vsel %vm145, 1, 0
    %v178 = vsel %vm146, 1, 0
    %v179 = vsel %vm147, 1, 0
    %v180 = vsel %vm148, 1, 0
    %v181 = vsel %vm149, 1, 0
    %v182 = vsel %vm150, 1, 0
    %v183 = vsel %vm151, 1, 0
    %v184 = vsel %vm152, 1, 0
    %v185 = vsel %vm153, 1, 0
    %v186 = vsel %vm154, 1, 0
    %v187 = vsel %vm155, 1, 0
    %v188 = vsel %vm156, 1, 0
    %v189 = vsel %vm157, 1, 0
    %v190 = vsel %vm158, 1, 0
    %v191 = vsel %vm159, 1, 0
    %v192 = vsel %vm160, 1, 0
    %v193 = vsel %vm161, 1, 0
    %v194 = vsel %vm162, 1, 0
    %v195 = vsel %vm163, 1, 0
    %v196 = vsel %vm164, 1, 0
    %v197 = vsel %vm165, 1, 0
    %v198 = vsel %vm166, 1, 0
    %v199 = vsel %vm167, 1, 0
    %v200 = vsel %vm168, 1, 0
    %v201 = vsel %vm169, 1, 0
    %v202 = vsel %vm170, 1, 0
    %v203 = vsel %vm171, 1, 0
    %v204 = vsel %vm172, 1, 0
    %v205 = vsel %vm173, 1, 0
    %v206 = vcvt.s32.f32 %v174
    %v207 = vcvt.s32.f32 %v175
    %v208 = vcvt.s32.f32 %v176
    %v209 = vcvt.s32.f32 %v177
    %v210 = vcvt.s32.f32 %v178
    %v211 = vcvt.s32.f32 %v179
    %v212 = vcvt.s32.f32 %v180
    %v213 = vcvt.s32.f32 %v181
    %v214 = vcvt.s32.f32 %v182
    %v215 = vcvt.s32.f32 %v183
    %v216 = vcvt.s32.f32 %v184
    %v217 = vcvt.s32.f32 %v185
    %v218 = vcvt.s32.f32 %v186
    %v219 = vcvt.s32.f32 %v187
    %v220 = vcvt.s32.f32 %v188
    %v221 = vcvt.s32.f32 %v189
    %v222 = vcvt.s32.f32 %v190
    %v223 = vcvt.s32.f32 %v191
    %v224 = vcvt.s32.f32 %v192
    %v225 = vcvt.s32.f32 %v193
    %v226 = vcvt.s32.f32 %v194
    %v227 = vcvt.s32.f32 %v195
    %v228 = vcvt.s32.f32 %v196
    %v229 = vcvt.s32.f32 %v197
    %v230 = vcvt.s32.f32 %v198
    %v231 = vcvt.s32.f32 %v199
    %v232 = vcvt.s32.f32 %v200
    %v233 = vcvt.s32.f32 %v201
    %v234 = vcvt.s32.f32 %v202
    %v235 = vcvt.s32.f32 %v203
    %v236 = vcvt.s32.f32 %v204
    %v237 = vcvt.s32.f32 %v205
    %v238 = vld [vmem:[%s1] sm:$0xff]
    %v239 = vld [vmem:[%s1 + $0x8] sm:$0xff]
    %v240 = vld [vmem:[%s1 + $0x10] sm:$0xff]
    %v241 = vld [vmem:[%s1 + $0x18] sm:$0xff]
    %v242 = vld [vmem:[%s1 + $0x20] sm:$0xff]
    %v243 = vld [vmem:[%s1 + $0x28] sm:$0xff]
    %v244 = vld [vmem:[%s1 + $0x30] sm:$0xff]
    %v245 = vld [vmem:[%s1 + $0x38] sm:$0xff]
    %v246 = vld [vmem:[%s1 + $0x40] sm:$0xff]
    %v247 = vld [vmem:[%s1 + $0x48] sm:$0xff]
    %v248 = vld [vmem:[%s1 + $0x50] sm:$0xff]
    %v249 = vld [vmem:[%s1 + $0x58] sm:$0xff]
    %v250 = vld [vmem:[%s1 + $0x60] sm:$0xff]
    %v251 = vld [vmem:[%s1 + $0x68] sm:$0xff]
    %v252 = vld [vmem:[%s1 + $0x70] sm:$0xff]
    %v253 = vld [vmem:[%s1 + $0x78] sm:$0xff]
    %254 = vmatprep.subr.mxu0 0.0
    %v255 = vand.u32 %v238, 4294901760
    %256 = vmatpush1.msra.mxu0 %v255
    %257 = vmatprep.subr.mxu0 0.0
    %v258 = vand.u32 %v239, 4294901760
    %259 = vmatpush1.msra.mxu0 %v258
    %260 = vmatprep.subr.mxu0 0.0
    %v261 = vand.u32 %v240, 4294901760
    %262 = vmatpush1.msra.mxu0 %v261
    %263 = vmatprep.subr.mxu0 0.0
    %v264 = vand.u32 %v241, 4294901760
    %265 = vmatpush1.msra.mxu0 %v264
    %266 = vmatprep.subr.mxu0 0.0
    %v267 = vand.u32 %v242, 4294901760
    %268 = vmatpush1.msra.mxu0 %v267
    %269 = vmatprep.subr.mxu0 0.0
    %v270 = vand.u32 %v243, 4294901760
    %271 = vmatpush1.msra.mxu0 %v270
    %272 = vmatprep.subr.mxu0 0.0
    %v273 = vand.u32 %v244, 4294901760
    %274 = vmatpush1.msra.mxu0 %v273
    %275 = vmatprep.subr.mxu0 0.0
    %v276 = vand.u32 %v245, 4294901760
    %277 = vmatpush1.msra.mxu0 %v276
    %278 = vmatprep.subr.mxu0 0.0
    %v279 = vand.u32 %v246, 4294901760
    %280 = vmatpush1.msra.mxu0 %v279
    %281 = vmatprep.subr.mxu0 0.0
    %v282 = vand.u32 %v247, 4294901760
    %283 = vmatpush1.msra.mxu0 %v282
    %284 = vmatprep.subr.mxu0 0.0
    %v285 = vand.u32 %v248, 4294901760
    %286 = vmatpush1.msra.mxu0 %v285
    %287 = vmatprep.subr.mxu0 0.0
    %v288 = vand.u32 %v249, 4294901760
    %289 = vmatpush1.msra.mxu0 %v288
    %290 = vmatprep.subr.mxu0 0.0
    %v291 = vand.u32 %v250, 4294901760
    %292 = vmatpush1.msra.mxu0 %v291
    %293 = vmatprep.subr.mxu0 0.0
    %v294 = vand.u32 %v251, 4294901760
    %295 = vmatpush1.msra.mxu0 %v294
    %296 = vmatprep.subr.mxu0 0.0
    %v297 = vand.u32 %v252, 4294901760
    %298 = vmatpush1.msra.mxu0 %v297
    %299 = vmatprep.subr.mxu0 0.0
    %v300 = vand.u32 %v253, 4294901760
    %301 = vmatpush1.msra.mxu0 %v300
    %302 = vmatprep.subr.mxu0 0.0
    %303 = vmatpush1.msra.mxu0 0.0
    %304 = vmatprep.subr.mxu0 0.0
    %305 = vmatpush1.msra.mxu0 0.0
    %306 = vmatprep.subr.mxu0 0.0
    %307 = vmatpush1.msra.mxu0 0.0
    %308 = vmatprep.subr.mxu0 0.0
    %309 = vmatpush1.msra.mxu0 0.0
    %310 = vmatprep.subr.mxu0 0.0
    %311 = vmatpush1.msra.mxu0 0.0
    %312 = vmatprep.subr.mxu0 0.0
    %313 = vmatpush1.msra.mxu0 0.0
    %314 = vmatprep.subr.mxu0 0.0
    %315 = vmatpush1.msra.mxu0 0.0
    %316 = vmatprep.subr.mxu0 0.0
    %317 = vmatpush1.msra.mxu0 0.0
    %318 = vmatprep.subr.mxu0 0.0
    %319 = vmatpush1.msra.mxu0 0.0
    %320 = vmatprep.subr.mxu0 0.0
    %321 = vmatpush1.msra.mxu0 0.0
    %322 = vmatprep.subr.mxu0 0.0
    %323 = vmatpush1.msra.mxu0 0.0
    %324 = vmatprep.subr.mxu0 0.0
    %325 = vmatpush1.msra.mxu0 0.0
    %326 = vmatprep.subr.mxu0 0.0
    %327 = vmatpush1.msra.mxu0 0.0
    %328 = vmatprep.subr.mxu0 0.0
    %329 = vmatpush1.msra.mxu0 0.0
    %330 = vmatprep.subr.mxu0 0.0
    %331 = vmatpush1.msra.mxu0 0.0
    %332 = vmatprep.subr.mxu0 0.0
    %333 = vmatpush1.msra.mxu0 0.0
    %334 = vmatprep.mubr.f32.mxu0 0.0
    %v335 = vand.u32 %v206, 4294901760
    %v336 = vsub.f32 %v206, %v335
    %v337 = vand.u32 %v336, 4294901760
    %v338 = vsub.f32 %v336, %v337
    %v339 = vand.u32 %v338, 4294901760
    %340 = vmatmul.mubr.f32.gmra.mrb[0].mxu0 %v339
    %v341 = vpop.f32.mrb[0].mxu0
    %v342 = vadd.f32 0.0, %v341
    %v343 = vpop.f32.mrb[0].mxu0
    %344 = vmatprep.mubr.f32.mxu0 0.0
    %v345 = vand.u32 %v207, 4294901760
    %v346 = vsub.f32 %v207, %v345
    %v347 = vand.u32 %v346, 4294901760
    %v348 = vsub.f32 %v346, %v347
    %v349 = vand.u32 %v348, 4294901760
    %350 = vmatmul.mubr.f32.gmra.mrb[0].mxu0 %v349
    %v351 = vpop.f32.mrb[0].mxu0
    %v352 = vadd.f32 0.0, %v351
    %v353 = vpop.f32.mrb[0].mxu0
    %354 = vmatprep.mubr.f32.mxu0 0.0
    %v355 = vand.u32 %v208, 4294901760
    %v356 = vsub.f32 %v208, %v355
    %v357 = vand.u32 %v356, 4294901760
    %v358 = vsub.f32 %v356, %v357
    %v359 = vand.u32 %v358, 4294901760
    %360 = vmatmul.mubr.f32.gmra.mrb[0].mxu0 %v359
    %v361 = vpop.f32.mrb[0].mxu0
    %v362 = vadd.f32 0.0, %v361
    %v363 = vpop.f32.mrb[0].mxu0
    %364 = vmatprep.mubr.f32.mxu0 0.0
    %v365 = vand.u32 %v209, 4294901760
    %v366 = vsub.f32 %v209, %v365
    %v367 = vand.u32 %v366, 4294901760
    %v368 = vsub.f32 %v366, %v367
    %v369 = vand.u32 %v368, 4294901760
    %370 = vmatmul.mubr.f32.gmra.mrb[0].mxu0 %v369
    %v371 = vpop.f32.mrb[0].mxu0
    %v372 = vadd.f32 0.0, %v371
    %v373 = vpop.f32.mrb[0].mxu0
    %374 = vmatprep.mubr.f32.mxu0 0.0
    %v375 = vand.u32 %v210, 4294901760
    %v376 = vsub.f32 %v210, %v375
    %v377 = vand.u32 %v376, 4294901760
    %v378 = vsub.f32 %v376, %v377
    %v379 = vand.u32 %v378, 4294901760
    %380 = vmatmul.mubr.f32.gmra.mrb[0].mxu0 %v379
    %v381 = vpop.f32.mrb[0].mxu0
    %v382 = vadd.f32 0.0, %v381
    %v383 = vpop.f32.mrb[0].mxu0
    %384 = vmatprep.mubr.f32.mxu0 0.0
    %v385 = vand.u32 %v211, 4294901760
    %v386 = vsub.f32 %v211, %v385
    %v387 = vand.u32 %v386, 4294901760
    %v388 = vsub.f32 %v386, %v387
    %v389 = vand.u32 %v388, 4294901760
    %390 = vmatmul.mubr.f32.gmra.mrb[0].mxu0 %v389
    %v391 = vpop.f32.mrb[0].mxu0
    %v392 = vadd.f32 0.0, %v391
    %v393 = vpop.f32.mrb[0].mxu0
    %394 = vmatprep.mubr.f32.mxu0 0.0
    %v395 = vand.u32 %v212, 4294901760
    %v396 = vsub.f32 %v212, %v395
    %v397 = vand.u32 %v396, 4294901760
    %v398 = vsub.f32 %v396, %v397
    %v399 = vand.u32 %v398, 4294901760
    %400 = vmatmul.mubr.f32.gmra.mrb[0].mxu0 %v399
    %v401 = vpop.f32.mrb[0].mxu0
    %v402 = vadd.f32 0.0, %v401
    %v403 = vpop.f32.mrb[0].mxu0
    %404 = vmatprep.mubr.f32.mxu0 0.0
    %v405 = vand.u32 %v213, 4294901760
    %v406 = vsub.f32 %v213, %v405
    %v407 = vand.u32 %v406, 4294901760
    %v408 = vsub.f32 %v406, %v407
    %v409 = vand.u32 %v408, 4294901760
    %410 = vmatmul.mubr.f32.gmra.mrb[0].mxu0 %v409
    %v411 = vpop.f32.mrb[0].mxu0
    %v412 = vadd.f32 0.0, %v411
    %v413 = vpop.f32.mrb[0].mxu0
    %414 = vmatprep.mubr.f32.mxu0 0.0
    %v415 = vand.u32 %v214, 4294901760
    %v416 = vsub.f32 %v214, %v415
    %v417 = vand.u32 %v416, 4294901760
    %v418 = vsub.f32 %v416, %v417
    %v419 = vand.u32 %v418, 4294901760
    %420 = vmatmul.mubr.f32.gmra.mrb[0].mxu0 %v419
    %v421 = vpop.f32.mrb[0].mxu0
    %v422 = vadd.f32 0.0, %v421
    %v423 = vpop.f32.mrb[0].mxu0
    %424 = vmatprep.mubr.f32.mxu0 0.0
    %v425 = vand.u32 %v215, 4294901760
    %v426 = vsub.f32 %v215, %v425
    %v427 = vand.u32 %v426, 4294901760
    %v428 = vsub.f32 %v426, %v427
    %v429 = vand.u32 %v428, 4294901760
    %430 = vmatmul.mubr.f32.gmra.mrb[0].mxu0 %v429
    %v431 = vpop.f32.mrb[0].mxu0
    %v432 = vadd.f32 0.0, %v431
    %v433 = vpop.f32.mrb[0].mxu0
    %434 = vmatprep.mubr.f32.mxu0 0.0
    %v435 = vand.u32 %v216, 4294901760
    %v436 = vsub.f32 %v216, %v435
    %v437 = vand.u32 %v436, 4294901760
    %v438 = vsub.f32 %v436, %v437
    %v439 = vand.u32 %v438, 4294901760
    %440 = vmatmul.mubr.f32.gmra.mrb[0].mxu0 %v439
    %v441 = vpop.f32.mrb[0].mxu0
    %v442 = vadd.f32 0.0, %v441
    %v443 = vpop.f32.mrb[0].mxu0
    %444 = vmatprep.mubr.f32.mxu0 0.0
    %v445 = vand.u32 %v217, 4294901760
    %v446 = vsub.f32 %v217, %v445
    %v447 = vand.u32 %v446, 4294901760
    %v448 = vsub.f32 %v446, %v447
    %v449 = vand.u32 %v448, 4294901760
    %450 = vmatmul.mubr.f32.gmra.mrb[0].mxu0 %v449
    %v451 = vpop.f32.mrb[0].mxu0
    %v452 = vadd.f32 0.0, %v451
    %v453 = vpop.f32.mrb[0].mxu0
    %454 = vmatprep.mubr.f32.mxu0 0.0
    %v455 = vand.u32 %v218, 4294901760
    %v456 = vsub.f32 %v218, %v455
    %v457 = vand.u32 %v456, 4294901760
    %v458 = vsub.f32 %v456, %v457
    %v459 = vand.u32 %v458, 4294901760
    %460 = vmatmul.mubr.f32.gmra.mrb[0].mxu0 %v459
    %v461 = vpop.f32.mrb[0].mxu0
    %v462 = vadd.f32 0.0, %v461
    %v463 = vpop.f32.mrb[0].mxu0
    %464 = vmatprep.mubr.f32.mxu0 0.0
    %v465 = vand.u32 %v219, 4294901760
    %v466 = vsub.f32 %v219, %v465
    %v467 = vand.u32 %v466, 4294901760
    %v468 = vsub.f32 %v466, %v467
    %v469 = vand.u32 %v468, 4294901760
    %470 = vmatmul.mubr.f32.gmra.mrb[0].mxu0 %v469
    %v471 = vpop.f32.mrb[0].mxu0
    %v472 = vadd.f32 0.0, %v471
    %v473 = vpop.f32.mrb[0].mxu0
    %474 = vmatprep.mubr.f32.mxu0 0.0
    %v475 = vand.u32 %v220, 4294901760
    %v476 = vsub.f32 %v220, %v475
    %v477 = vand.u32 %v476, 4294901760
    %v478 = vsub.f32 %v476, %v477
    %v479 = vand.u32 %v478, 4294901760
    %480 = vmatmul.mubr.f32.gmra.mrb[0].mxu0 %v479
    %v481 = vpop.f32.mrb[0].mxu0
    %v482 = vadd.f32 0.0, %v481
    %v483 = vpop.f32.mrb[0].mxu0
    %484 = vmatprep.mubr.f32.mxu0 0.0
    %v485 = vand.u32 %v221, 4294901760
    %v486 = vsub.f32 %v221, %v485
    %v487 = vand.u32 %v486, 4294901760
    %v488 = vsub.f32 %v486, %v487
    %v489 = vand.u32 %v488, 4294901760
    %490 = vmatmul.mubr.f32.gmra.mrb[0].mxu0 %v489
    %v491 = vpop.f32.mrb[0].mxu0
    %v492 = vadd.f32 0.0, %v491
    %v493 = vpop.f32.mrb[0].mxu0
    %494 = vmatprep.mubr.f32.mxu0 0.0
    %v495 = vand.u32 %v222, 4294901760
    %v496 = vsub.f32 %v222, %v495
    %v497 = vand.u32 %v496, 4294901760
    %v498 = vsub.f32 %v496, %v497
    %v499 = vand.u32 %v498, 4294901760
    %500 = vmatmul.mubr.f32.gmra.mrb[0].mxu0 %v499
    %v501 = vpop.f32.mrb[0].mxu0
    %v502 = vadd.f32 0.0, %v501
    %v503 = vpop.f32.mrb[0].mxu0
    %504 = vmatprep.mubr.f32.mxu0 0.0
    %v505 = vand.u32 %v223, 4294901760
    %v506 = vsub.f32 %v223, %v505
    %v507 = vand.u32 %v506, 4294901760
    %v508 = vsub.f32 %v506, %v507
    %v509 = vand.u32 %v508, 4294901760
    %510 = vmatmul.mubr.f32.gmra.mrb[0].mxu0 %v509
    %v511 = vpop.f32.mrb[0].mxu0
    %v512 = vadd.f32 0.0, %v511
    %v513 = vpop.f32.mrb[0].mxu0
    %514 = vmatprep.mubr.f32.mxu0 0.0
    %v515 = vand.u32 %v224, 4294901760
    %v516 = vsub.f32 %v224, %v515
    %v517 = vand.u32 %v516, 4294901760
    %v518 = vsub.f32 %v516, %v517
    %v519 = vand.u32 %v518, 4294901760
    %520 = vmatmul.mubr.f32.gmra.mrb[0].mxu0 %v519
    %v521 = vpop.f32.mrb[0].mxu0
    %v522 = vadd.f32 0.0, %v521
    %v523 = vpop.f32.mrb[0].mxu0
    %524 = vmatprep.mubr.f32.mxu0 0.0
    %v525 = vand.u32 %v225, 4294901760
    %v526 = vsub.f32 %v225, %v525
    %v527 = vand.u32 %v526, 4294901760
    %v528 = vsub.f32 %v526, %v527
    %v529 = vand.u32 %v528, 4294901760
    %530 = vmatmul.mubr.f32.gmra.mrb[0].mxu0 %v529
    %v531 = vpop.f32.mrb[0].mxu0
    %v532 = vadd.f32 0.0, %v531
    %v533 = vpop.f32.mrb[0].mxu0
    %534 = vmatprep.mubr.f32.mxu0 0.0
    %v535 = vand.u32 %v226, 4294901760
    %v536 = vsub.f32 %v226, %v535
    %v537 = vand.u32 %v536, 4294901760
    %v538 = vsub.f32 %v536, %v537
    %v539 = vand.u32 %v538, 4294901760
    %540 = vmatmul.mubr.f32.gmra.mrb[0].mxu0 %v539
    %v541 = vpop.f32.mrb[0].mxu0
    %v542 = vadd.f32 0.0, %v541
    %v543 = vpop.f32.mrb[0].mxu0
    %544 = vmatprep.mubr.f32.mxu0 0.0
    %v545 = vand.u32 %v227, 4294901760
    %v546 = vsub.f32 %v227, %v545
    %v547 = vand.u32 %v546, 4294901760
    %v548 = vsub.f32 %v546, %v547
    %v549 = vand.u32 %v548, 4294901760
    %550 = vmatmul.mubr.f32.gmra.mrb[0].mxu0 %v549
    %v551 = vpop.f32.mrb[0].mxu0
    %v552 = vadd.f32 0.0, %v551
    %v553 = vpop.f32.mrb[0].mxu0
    %554 = vmatprep.mubr.f32.mxu0 0.0
    %v555 = vand.u32 %v228, 4294901760
    %v556 = vsub.f32 %v228, %v555
    %v557 = vand.u32 %v556, 4294901760
    %v558 = vsub.f32 %v556, %v557
    %v559 = vand.u32 %v558, 4294901760
    %560 = vmatmul.mubr.f32.gmra.mrb[0].mxu0 %v559
    %v561 = vpop.f32.mrb[0].mxu0
    %v562 = vadd.f32 0.0, %v561
    %v563 = vpop.f32.mrb[0].mxu0
    %564 = vmatprep.mubr.f32.mxu0 0.0
    %v565 = vand.u32 %v229, 4294901760
    %v566 = vsub.f32 %v229, %v565
    %v567 = vand.u32 %v566, 4294901760
    %v568 = vsub.f32 %v566, %v567
    %v569 = vand.u32 %v568, 4294901760
    %570 = vmatmul.mubr.f32.gmra.mrb[0].mxu0 %v569
    %v571 = vpop.f32.mrb[0].mxu0
    %v572 = vadd.f32 0.0, %v571
    %v573 = vpop.f32.mrb[0].mxu0
    %574 = vmatprep.mubr.f32.mxu0 0.0
    %v575 = vand.u32 %v230, 4294901760
    %v576 = vsub.f32 %v230, %v575
    %v577 = vand.u32 %v576, 4294901760
    %v578 = vsub.f32 %v576, %v577
    %v579 = vand.u32 %v578, 4294901760
    %580 = vmatmul.mubr.f32.gmra.mrb[0].mxu0 %v579
    %v581 = vpop.f32.mrb[0].mxu0
    %v582 = vadd.f32 0.0, %v581
    %v583 = vpop.f32.mrb[0].mxu0
    %584 = vmatprep.mubr.f32.mxu0 0.0
    %v585 = vand.u32 %v231, 4294901760
    %v586 = vsub.f32 %v231, %v585
    %v587 = vand.u32 %v586, 4294901760
    %v588 = vsub.f32 %v586, %v587
    %v589 = vand.u32 %v588, 4294901760
    %590 = vmatmul.mubr.f32.gmra.mrb[0].mxu0 %v589
    %v591 = vpop.f32.mrb[0].mxu0
    %v592 = vadd.f32 0.0, %v591
    %v593 = vpop.f32.mrb[0].mxu0
    %594 = vmatprep.mubr.f32.mxu0 0.0
    %v595 = vand.u32 %v232, 4294901760
    %v596 = vsub.f32 %v232, %v595
    %v597 = vand.u32 %v596, 4294901760
    %v598 = vsub.f32 %v596, %v597
    %v599 = vand.u32 %v598, 4294901760
    %600 = vmatmul.mubr.f32.gmra.mrb[0].mxu0 %v599
    %v601 = vpop.f32.mrb[0].mxu0
    %v602 = vadd.f32 0.0, %v601
    %v603 = vpop.f32.mrb[0].mxu0
    %604 = vmatprep.mubr.f32.mxu0 0.0
    %v605 = vand.u32 %v233, 4294901760
    %v606 = vsub.f32 %v233, %v605
    %v607 = vand.u32 %v606, 4294901760
    %v608 = vsub.f32 %v606, %v607
    %v609 = vand.u32 %v608, 4294901760
    %610 = vmatmul.mubr.f32.gmra.mrb[0].mxu0 %v609
    %v611 = vpop.f32.mrb[0].mxu0
    %v612 = vadd.f32 0.0, %v611
    %v613 = vpop.f32.mrb[0].mxu0
    %614 = vmatprep.mubr.f32.mxu0 0.0
    %v615 = vand.u32 %v234, 4294901760
    %v616 = vsub.f32 %v234, %v615
    %v617 = vand.u32 %v616, 4294901760
    %v618 = vsub.f32 %v616, %v617
    %v619 = vand.u32 %v618, 4294901760
    %620 = vmatmul.mubr.f32.gmra.mrb[0].mxu0 %v619
    %v621 = vpop.f32.mrb[0].mxu0
    %v622 = vadd.f32 0.0, %v621
    %v623 = vpop.f32.mrb[0].mxu0
    %624 = vmatprep.mubr.f32.mxu0 0.0
    %v625 = vand.u32 %v235, 4294901760
    %v626 = vsub.f32 %v235, %v625
    %v627 = vand.u32 %v626, 4294901760
    %v628 = vsub.f32 %v626, %v627
    %v629 = vand.u32 %v628, 4294901760
    %630 = vmatmul.mubr.f32.gmra.mrb[0].mxu0 %v629
    %v631 = vpop.f32.mrb[0].mxu0
    %v632 = vadd.f32 0.0, %v631
    %v633 = vpop.f32.mrb[0].mxu0
    %634 = vmatprep.mubr.f32.mxu0 0.0
    %v635 = vand.u32 %v236, 4294901760
    %v636 = vsub.f32 %v236, %v635
    %v637 = vand.u32 %v636, 4294901760
    %v638 = vsub.f32 %v636, %v637
    %v639 = vand.u32 %v638, 4294901760
    %640 = vmatmul.mubr.f32.gmra.mrb[0].mxu0 %v639
    %v641 = vpop.f32.mrb[0].mxu0
    %v642 = vadd.f32 0.0, %v641
    %v643 = vpop.f32.mrb[0].mxu0
    %644 = vmatprep.mubr.f32.mxu0 0.0
    %v645 = vand.u32 %v237, 4294901760
    %v646 = vsub.f32 %v237, %v645
    %v647 = vand.u32 %v646, 4294901760
    %v648 = vsub.f32 %v646, %v647
    %v649 = vand.u32 %v648, 4294901760
    %650 = vmatmul.mubr.f32.gmra.mrb[0].mxu0 %v649
    %v651 = vpop.f32.mrb[0].mxu0
    %v652 = vadd.f32 0.0, %v651
    %v653 = vpop.f32.mrb[0].mxu0
    %654 = vdwg.mxu0
    %655 = vmatprep.subr.mxu0 0.0
    %v656 = vand.u32 %v238, 4294901760
    %v657 = vsub.f32 %v238, %v656
    %v658 = vand.u32 %v657, 4294901760
    %v659 = vsub.f32 %v657, %v658
    %v660 = vand.u32 %v659, 4294901760
    %661 = vmatpush1.msra.mxu0 %v660
    %662 = vmatprep.subr.mxu0 0.0
    %v663 = vand.u32 %v239, 4294901760
    %v664 = vsub.f32 %v239, %v663
    %v665 = vand.u32 %v664, 4294901760
    %v666 = vsub.f32 %v664, %v665
    %v667 = vand.u32 %v666, 4294901760
    %668 = vmatpush1.msra.mxu0 %v667
    %669 = vmatprep.subr.mxu0 0.0
    %v670 = vand.u32 %v240, 4294901760
    %v671 = vsub.f32 %v240, %v670
    %v672 = vand.u32 %v671, 4294901760
    %v673 = vsub.f32 %v671, %v672
    %v674 = vand.u32 %v673, 4294901760
    %675 = vmatpush1.msra.mxu0 %v674
    %676 = vmatprep.subr.mxu0 0.0
    %v677 = vand.u32 %v241, 4294901760
    %v678 = vsub.f32 %v241, %v677
    %v679 = vand.u32 %v678, 4294901760
    %v680 = vsub.f32 %v678, %v679
    %v681 = vand.u32 %v680, 4294901760
    %682 = vmatpush1.msra.mxu0 %v681
    %683 = vmatprep.subr.mxu0 0.0
    %v684 = vand.u32 %v242, 4294901760
    %v685 = vsub.f32 %v242, %v684
    %v686 = vand.u32 %v685, 4294901760
    %v687 = vsub.f32 %v685, %v686
    %v688 = vand.u32 %v687, 4294901760
    %689 = vmatpush1.msra.mxu0 %v688
    %690 = vmatprep.subr.mxu0 0.0
    %v691 = vand.u32 %v243, 4294901760
    %v692 = vsub.f32 %v243, %v691
    %v693 = vand.u32 %v692, 4294901760
    %v694 = vsub.f32 %v692, %v693
    %v695 = vand.u32 %v694, 4294901760
    %696 = vmatpush1.msra.mxu0 %v695
    %697 = vmatprep.subr.mxu0 0.0
    %v698 = vand.u32 %v244, 4294901760
    %v699 = vsub.f32 %v244, %v698
    %v700 = vand.u32 %v699, 4294901760
    %v701 = vsub.f32 %v699, %v700
    %v702 = vand.u32 %v701, 4294901760
    %703 = vmatpush1.msra.mxu0 %v702
    %704 = vmatprep.subr.mxu0 0.0
    %v705 = vand.u32 %v245, 4294901760
    %v706 = vsub.f32 %v245, %v705
    %v707 = vand.u32 %v706, 4294901760
    %v708 = vsub.f32 %v706, %v707
    %v709 = vand.u32 %v708, 4294901760
    %710 = vmatpush1.msra.mxu0 %v709
    %711 = vmatprep.subr.mxu0 0.0
    %v712 = vand.u32 %v246, 4294901760
    %v713 = vsub.f32 %v246, %v712
    %v714 = vand.u32 %v713, 4294901760
    %v715 = vsub.f32 %v713, %v714
    %v716 = vand.u32 %v715, 4294901760
    %717 = vmatpush1.msra.mxu0 %v716
    %718 = vmatprep.subr.mxu0 0.0
    %v719 = vand.u32 %v247, 4294901760
    %v720 = vsub.f32 %v247, %v719
    %v721 = vand.u32 %v720, 4294901760
    %v722 = vsub.f32 %v720, %v721
    %v723 = vand.u32 %v722, 4294901760
    %724 = vmatpush1.msra.mxu0 %v723
    %725 = vmatprep.subr.mxu0 0.0
    %v726 = vand.u32 %v248, 4294901760
    %v727 = vsub.f32 %v248, %v726
    %v728 = vand.u32 %v727, 4294901760
    %v729 = vsub.f32 %v727, %v728
    %v730 = vand.u32 %v729, 4294901760
    %731 = vmatpush1.msra.mxu0 %v730
    %732 = vmatprep.subr.mxu0 0.0
    %v733 = vand.u32 %v249, 4294901760
    %v734 = vsub.f32 %v249, %v733
    %v735 = vand.u32 %v734, 4294901760
    %v736 = vsub.f32 %v734, %v735
    %v737 = vand.u32 %v736, 4294901760
    %738 = vmatpush1.msra.mxu0 %v737
    %739 = vmatprep.subr.mxu0 0.0
    %v740 = vand.u32 %v250, 4294901760
    %v741 = vsub.f32 %v250, %v740
    %v742 = vand.u32 %v741, 4294901760
    %v743 = vsub.f32 %v741, %v742
    %v744 = vand.u32 %v743, 4294901760
    %745 = vmatpush1.msra.mxu0 %v744
    %746 = vmatprep.subr.mxu0 0.0
    %v747 = vand.u32 %v251, 4294901760
    %v748 = vsub.f32 %v251, %v747
    %v749 = vand.u32 %v748, 4294901760
    %v750 = vsub.f32 %v748, %v749
    %v751 = vand.u32 %v750, 4294901760
    %752 = vmatpush1.msra.mxu0 %v751
    %753 = vmatprep.subr.mxu0 0.0
    %v754 = vand.u32 %v252, 4294901760
    %v755 = vsub.f32 %v252, %v754
    %v756 = vand.u32 %v755, 4294901760
    %v757 = vsub.f32 %v755, %v756
    %v758 = vand.u32 %v757, 4294901760
    %759 = vmatpush1.msra.mxu0 %v758
    %760 = vmatprep.subr.mxu0 0.0
    %v761 = vand.u32 %v253, 4294901760
    %v762 = vsub.f32 %v253, %v761
    %v763 = vand.u32 %v762, 4294901760
    %v764 = vsub.f32 %v762, %v763
    %v765 = vand.u32 %v764, 4294901760
    %766 = vmatpush1.msra.mxu0 %v765
    %767 = vmatprep.subr.mxu0 0.0
    %768 = vmatpush1.msra.mxu0 0.0
    %769 = vmatprep.subr.mxu0 0.0
    %770 = vmatpush1.msra.mxu0 0.0
    %771 = vmatprep.subr.mxu0 0.0
    %772 = vmatpush1.msra.mxu0 0.0
    %773 = vmatprep.subr.mxu0 0.0
    %774 = vmatpush1.msra.mxu0 0.0
    %775 = vmatprep.subr.mxu0 0.0
    %776 = vmatpush1.msra.mxu0 0.0
    %777 = vmatprep.subr.mxu0 0.0
    %778 = vmatpush1.msra.mxu0 0.0
    %779 = vmatprep.subr.mxu0 0.0
    %780 = vmatpush1.msra.mxu0 0.0
    %781 = vmatprep.subr.mxu0 0.0
    %782 = vmatpush1.msra.mxu0 0.0
    %783 = vmatprep.subr.mxu0 0.0
    %784 = vmatpush1.msra.mxu0 0.0
    %785 = vmatprep.subr.mxu0 0.0
    %786 = vmatpush1.msra.mxu0 0.0
    %787 = vmatprep.subr.mxu0 0.0
    %788 = vmatpush1.msra.mxu0 0.0
    %789 = vmatprep.subr.mxu0 0.0
    %790 = vmatpush1.msra.mxu0 0.0
    %791 = vmatprep.subr.mxu0 0.0
    %792 = vmatpush1.msra.mxu0 0.0
    %793 = vmatprep.subr.mxu0 0.0
    %794 = vmatpush1.msra.mxu0 0.0
    %795 = vmatprep.subr.mxu0 0.0
    %796 = vmatpush1.msra.mxu0 0.0
    %797 = vmatprep.subr.mxu0 0.0
    %798 = vmatpush1.msra.mxu0 0.0
    %799 = vmatprep.mubr.f32.mxu0 0.0
    %v800 = vand.u32 %v206, 4294901760
    %801 = vmatmul.mubr.f32.gmra.mrb[0].mxu0 %v800
    %v802 = vpop.f32.mrb[0].mxu0
    %v803 = vadd.f32 %v342, %v802
    %v804 = vpop.f32.mrb[0].mxu0
    %805 = vmatprep.mubr.f32.mxu0 0.0
    %v806 = vand.u32 %v207, 4294901760
    %807 = vmatmul.mubr.f32.gmra.mrb[0].mxu0 %v806
    %v808 = vpop.f32.mrb[0].mxu0
    %v809 = vadd.f32 %v352, %v808
    %v810 = vpop.f32.mrb[0].mxu0
    %811 = vmatprep.mubr.f32.mxu0 0.0
    %v812 = vand.u32 %v208, 4294901760
    %813 = vmatmul.mubr.f32.gmra.mrb[0].mxu0 %v812
    %v814 = vpop.f32.mrb[0].mxu0
    %v815 = vadd.f32 %v362, %v814
    %v816 = vpop.f32.mrb[0].mxu0
    %817 = vmatprep.mubr.f32.mxu0 0.0
    %v818 = vand.u32 %v209, 4294901760
    %819 = vmatmul.mubr.f32.gmra.mrb[0].mxu0 %v818
    %v820 = vpop.f32.mrb[0].mxu0
    %v821 = vadd.f32 %v372, %v820
    %v822 = vpop.f32.mrb[0].mxu0
    %823 = vmatprep.mubr.f32.mxu0 0.0
    %v824 = vand.u32 %v210, 4294901760
    %825 = vmatmul.mubr.f32.gmra.mrb[0].mxu0 %v824
    %v826 = vpop.f32.mrb[0].mxu0
    %v827 = vadd.f32 %v382, %v826
    %v828 = vpop.f32.mrb[0].mxu0
    %829 = vmatprep.mubr.f32.mxu0 0.0
    %v830 = vand.u32 %v211, 4294901760
    %831 = vmatmul.mubr.f32.gmra.mrb[0].mxu0 %v830
    %v832 = vpop.f32.mrb[0].mxu0
    %v833 = vadd.f32 %v392, %v832
    %v834 = vpop.f32.mrb[0].mxu0
    %835 = vmatprep.mubr.f32.mxu0 0.0
    %v836 = vand.u32 %v212, 4294901760
    %837 = vmatmul.mubr.f32.gmra.mrb[0].mxu0 %v836
    %v838 = vpop.f32.mrb[0].mxu0
    %v839 = vadd.f32 %v402, %v838
    %v840 = vpop.f32.mrb[0].mxu0
    %841 = vmatprep.mubr.f32.mxu0 0.0
    %v842 = vand.u32 %v213, 4294901760
    %843 = vmatmul.mubr.f32.gmra.mrb[0].mxu0 %v842
    %v844 = vpop.f32.mrb[0].mxu0
    %v845 = vadd.f32 %v412, %v844
    %v846 = vpop.f32.mrb[0].mxu0
    %847 = vmatprep.mubr.f32.mxu0 0.0
    %v848 = vand.u32 %v214, 4294901760
    %849 = vmatmul.mubr.f32.gmra.mrb[0].mxu0 %v848
    %v850 = vpop.f32.mrb[0].mxu0
    %v851 = vadd.f32 %v422, %v850
    %v852 = vpop.f32.mrb[0].mxu0
    %853 = vmatprep.mubr.f32.mxu0 0.0
    %v854 = vand.u32 %v215, 4294901760
    %855 = vmatmul.mubr.f32.gmra.mrb[0].mxu0 %v854
    %v856 = vpop.f32.mrb[0].mxu0
    %v857 = vadd.f32 %v432, %v856
    %v858 = vpop.f32.mrb[0].mxu0
    %859 = vmatprep.mubr.f32.mxu0 0.0
    %v860 = vand.u32 %v216, 4294901760
    %861 = vmatmul.mubr.f32.gmra.mrb[0].mxu0 %v860
    %v862 = vpop.f32.mrb[0].mxu0
    %v863 = vadd.f32 %v442, %v862
    %v864 = vpop.f32.mrb[0].mxu0
    %865 = vmatprep.mubr.f32.mxu0 0.0
    %v866 = vand.u32 %v217, 4294901760
    %867 = vmatmul.mubr.f32.gmra.mrb[0].mxu0 %v866
    %v868 = vpop.f32.mrb[0].mxu0
    %v869 = vadd.f32 %v452, %v868
    %v870 = vpop.f32.mrb[0].mxu0
    %871 = vmatprep.mubr.f32.mxu0 0.0
    %v872 = vand.u32 %v218, 4294901760
    %873 = vmatmul.mubr.f32.gmra.mrb[0].mxu0 %v872
    %v874 = vpop.f32.mrb[0].mxu0
    %v875 = vadd.f32 %v462, %v874
    %v876 = vpop.f32.mrb[0].mxu0
    %877 = vmatprep.mubr.f32.mxu0 0.0
    %v878 = vand.u32 %v219, 4294901760
    %879 = vmatmul.mubr.f32.gmra.mrb[0].mxu0 %v878
    %v880 = vpop.f32.mrb[0].mxu0
    %v881 = vadd.f32 %v472, %v880
    %v882 = vpop.f32.mrb[0].mxu0
    %883 = vmatprep.mubr.f32.mxu0 0.0
    %v884 = vand.u32 %v220, 4294901760
    %885 = vmatmul.mubr.f32.gmra.mrb[0].mxu0 %v884
    %v886 = vpop.f32.mrb[0].mxu0
    %v887 = vadd.f32 %v482, %v886
    %v888 = vpop.f32.mrb[0].mxu0
    %889 = vmatprep.mubr.f32.mxu0 0.0
    %v890 = vand.u32 %v221, 4294901760
    %891 = vmatmul.mubr.f32.gmra.mrb[0].mxu0 %v890
    %v892 = vpop.f32.mrb[0].mxu0
    %v893 = vadd.f32 %v492, %v892
    %v894 = vpop.f32.mrb[0].mxu0
    %895 = vmatprep.mubr.f32.mxu0 0.0
    %v896 = vand.u32 %v222, 4294901760
    %897 = vmatmul.mubr.f32.gmra.mrb[0].mxu0 %v896
    %v898 = vpop.f32.mrb[0].mxu0
    %v899 = vadd.f32 %v502, %v898
    %v900 = vpop.f32.mrb[0].mxu0
    %901 = vmatprep.mubr.f32.mxu0 0.0
    %v902 = vand.u32 %v223, 4294901760
    %903 = vmatmul.mubr.f32.gmra.mrb[0].mxu0 %v902
    %v904 = vpop.f32.mrb[0].mxu0
    %v905 = vadd.f32 %v512, %v904
    %v906 = vpop.f32.mrb[0].mxu0
    %907 = vmatprep.mubr.f32.mxu0 0.0
    %v908 = vand.u32 %v224, 4294901760
    %909 = vmatmul.mubr.f32.gmra.mrb[0].mxu0 %v908
    %v910 = vpop.f32.mrb[0].mxu0
    %v911 = vadd.f32 %v522, %v910
    %v912 = vpop.f32.mrb[0].mxu0
    %913 = vmatprep.mubr.f32.mxu0 0.0
    %v914 = vand.u32 %v225, 4294901760
    %915 = vmatmul.mubr.f32.gmra.mrb[0].mxu0 %v914
    %v916 = vpop.f32.mrb[0].mxu0
    %v917 = vadd.f32 %v532, %v916
    %v918 = vpop.f32.mrb[0].mxu0
    %919 = vmatprep.mubr.f32.mxu0 0.0
    %v920 = vand.u32 %v226, 4294901760
    %921 = vmatmul.mubr.f32.gmra.mrb[0].mxu0 %v920
    %v922 = vpop.f32.mrb[0].mxu0
    %v923 = vadd.f32 %v542, %v922
    %v924 = vpop.f32.mrb[0].mxu0
    %925 = vmatprep.mubr.f32.mxu0 0.0
    %v926 = vand.u32 %v227, 4294901760
    %927 = vmatmul.mubr.f32.gmra.mrb[0].mxu0 %v926
    %v928 = vpop.f32.mrb[0].mxu0
    %v929 = vadd.f32 %v552, %v928
    %v930 = vpop.f32.mrb[0].mxu0
    %931 = vmatprep.mubr.f32.mxu0 0.0
    %v932 = vand.u32 %v228, 4294901760
    %933 = vmatmul.mubr.f32.gmra.mrb[0].mxu0 %v932
    %v934 = vpop.f32.mrb[0].mxu0
    %v935 = vadd.f32 %v562, %v934
    %v936 = vpop.f32.mrb[0].mxu0
    %937 = vmatprep.mubr.f32.mxu0 0.0
    %v938 = vand.u32 %v229, 4294901760
    %939 = vmatmul.mubr.f32.gmra.mrb[0].mxu0 %v938
    %v940 = vpop.f32.mrb[0].mxu0
    %v941 = vadd.f32 %v572, %v940
    %v942 = vpop.f32.mrb[0].mxu0
    %943 = vmatprep.mubr.f32.mxu0 0.0
    %v944 = vand.u32 %v230, 4294901760
    %945 = vmatmul.mubr.f32.gmra.mrb[0].mxu0 %v944
    %v946 = vpop.f32.mrb[0].mxu0
    %v947 = vadd.f32 %v582, %v946
    %v948 = vpop.f32.mrb[0].mxu0
    %949 = vmatprep.mubr.f32.mxu0 0.0
    %v950 = vand.u32 %v231, 4294901760
    %951 = vmatmul.mubr.f32.gmra.mrb[0].mxu0 %v950
    %v952 = vpop.f32.mrb[0].mxu0
    %v953 = vadd.f32 %v592, %v952
    %v954 = vpop.f32.mrb[0].mxu0
    %955 = vmatprep.mubr.f32.mxu0 0.0
    %v956 = vand.u32 %v232, 4294901760
    %957 = vmatmul.mubr.f32.gmra.mrb[0].mxu0 %v956
    %v958 = vpop.f32.mrb[0].mxu0
    %v959 = vadd.f32 %v602, %v958
    %v960 = vpop.f32.mrb[0].mxu0
    %961 = vmatprep.mubr.f32.mxu0 0.0
    %v962 = vand.u32 %v233, 4294901760
    %963 = vmatmul.mubr.f32.gmra.mrb[0].mxu0 %v962
    %v964 = vpop.f32.mrb[0].mxu0
    %v965 = vadd.f32 %v612, %v964
    %v966 = vpop.f32.mrb[0].mxu0
    %967 = vmatprep.mubr.f32.mxu0 0.0
    %v968 = vand.u32 %v234, 4294901760
    %969 = vmatmul.mubr.f32.gmra.mrb[0].mxu0 %v968
    %v970 = vpop.f32.mrb[0].mxu0
    %v971 = vadd.f32 %v622, %v970
    %v972 = vpop.f32.mrb[0].mxu0
    %973 = vmatprep.mubr.f32.mxu0 0.0
    %v974 = vand.u32 %v235, 4294901760
    %975 = vmatmul.mubr.f32.gmra.mrb[0].mxu0 %v974
    %v976 = vpop.f32.mrb[0].mxu0
    %v977 = vadd.f32 %v632, %v976
    %v978 = vpop.f32.mrb[0].mxu0
    %979 = vmatprep.mubr.f32.mxu0 0.0
    %v980 = vand.u32 %v236, 4294901760
    %981 = vmatmul.mubr.f32.gmra.mrb[0].mxu0 %v980
    %v982 = vpop.f32.mrb[0].mxu0
    %v983 = vadd.f32 %v642, %v982
    %v984 = vpop.f32.mrb[0].mxu0
    %985 = vmatprep.mubr.f32.mxu0 0.0
    %v986 = vand.u32 %v237, 4294901760
    %987 = vmatmul.mubr.f32.gmra.mrb[0].mxu0 %v986
    %v988 = vpop.f32.mrb[0].mxu0
    %v989 = vadd.f32 %v652, %v988
    %v990 = vpop.f32.mrb[0].mxu0
    %991 = vdwg.mxu0
    %992 = vmatprep.subr.mxu0 0.0
    %v993 = vand.u32 %v238, 4294901760
    %v994 = vsub.f32 %v238, %v993
    %995 = vmatpush1.msra.mxu0 %v994
    %996 = vmatprep.subr.mxu0 0.0
    %v997 = vand.u32 %v239, 4294901760
    %v998 = vsub.f32 %v239, %v997
    %999 = vmatpush1.msra.mxu0 %v998
    %1000 = vmatprep.subr.mxu0 0.0
    %v1001 = vand.u32 %v240, 4294901760
    %v1002 = vsub.f32 %v240, %v1001
    %1003 = vmatpush1.msra.mxu0 %v1002
    %1004 = vmatprep.subr.mxu0 0.0
    %v1005 = vand.u32 %v241, 4294901760
    %v1006 = vsub.f32 %v241, %v1005
    %1007 = vmatpush1.msra.mxu0 %v1006
    %1008 = vmatprep.subr.mxu0 0.0
    %v1009 = vand.u32 %v242, 4294901760
    %v1010 = vsub.f32 %v242, %v1009
    %1011 = vmatpush1.msra.mxu0 %v1010
    %1012 = vmatprep.subr.mxu0 0.0
    %v1013 = vand.u32 %v243, 4294901760
    %v1014 = vsub.f32 %v243, %v1013
    %1015 = vmatpush1.msra.mxu0 %v1014
    %1016 = vmatprep.subr.mxu0 0.0
    %v1017 = vand.u32 %v244, 4294901760
    %v1018 = vsub.f32 %v244, %v1017
    %1019 = vmatpush1.msra.mxu0 %v1018
    %1020 = vmatprep.subr.mxu0 0.0
    %v1021 = vand.u32 %v245, 4294901760
    %v1022 = vsub.f32 %v245, %v1021
    %1023 = vmatpush1.msra.mxu0 %v1022
    %1024 = vmatprep.subr.mxu0 0.0
    %v1025 = vand.u32 %v246, 4294901760
    %v1026 = vsub.f32 %v246, %v1025
    %1027 = vmatpush1.msra.mxu0 %v1026
    %1028 = vmatprep.subr.mxu0 0.0
    %v1029 = vand.u32 %v247, 4294901760
    %v1030 = vsub.f32 %v247, %v1029
    %1031 = vmatpush1.msra.mxu0 %v1030
    %1032 = vmatprep.subr.mxu0 0.0
    %v1033 = vand.u32 %v248, 4294901760
    %v1034 = vsub.f32 %v248, %v1033
    %1035 = vmatpush1.msra.mxu0 %v1034
    %1036 = vmatprep.subr.mxu0 0.0
    %v1037 = vand.u32 %v249, 4294901760
    %v1038 = vsub.f32 %v249, %v1037
    %1039 = vmatpush1.msra.mxu0 %v1038
    %1040 = vmatprep.subr.mxu0 0.0
    %v1041 = vand.u32 %v250, 4294901760
    %v1042 = vsub.f32 %v250, %v1041
    %1043 = vmatpush1.msra.mxu0 %v1042
    %1044 = vmatprep.subr.mxu0 0.0
    %v1045 = vand.u32 %v251, 4294901760
    %v1046 = vsub.f32 %v251, %v1045
    %1047 = vmatpush1.msra.mxu0 %v1046
    %1048 = vmatprep.subr.mxu0 0.0
    %v1049 = vand.u32 %v252, 4294901760
    %v1050 = vsub.f32 %v252, %v1049
    %1051 = vmatpush1.msra.mxu0 %v1050
    %1052 = vmatprep.subr.mxu0 0.0
    %v1053 = vand.u32 %v253, 4294901760
    %v1054 = vsub.f32 %v253, %v1053
    %1055 = vmatpush1.msra.mxu0 %v1054
    %1056 = vmatprep.subr.mxu0 0.0
    %1057 = vmatpush1.msra.mxu0 0.0
    %1058 = vmatprep.subr.mxu0 0.0
    %1059 = vmatpush1.msra.mxu0 0.0
    %1060 = vmatprep.subr.mxu0 0.0
    %1061 = vmatpush1.msra.mxu0 0.0
    %1062 = vmatprep.subr.mxu0 0.0
    %1063 = vmatpush1.msra.mxu0 0.0
    %1064 = vmatprep.subr.mxu0 0.0
    %1065 = vmatpush1.msra.mxu0 0.0
    %1066 = vmatprep.subr.mxu0 0.0
    %1067 = vmatpush1.msra.mxu0 0.0
    %1068 = vmatprep.subr.mxu0 0.0
    %1069 = vmatpush1.msra.mxu0 0.0
    %1070 = vmatprep.subr.mxu0 0.0
    %1071 = vmatpush1.msra.mxu0 0.0
    %1072 = vmatprep.subr.mxu0 0.0
    %1073 = vmatpush1.msra.mxu0 0.0
    %1074 = vmatprep.subr.mxu0 0.0
    %1075 = vmatpush1.msra.mxu0 0.0
    %1076 = vmatprep.subr.mxu0 0.0
    %1077 = vmatpush1.msra.mxu0 0.0
    %1078 = vmatprep.subr.mxu0 0.0
    %1079 = vmatpush1.msra.mxu0 0.0
    %1080 = vmatprep.subr.mxu0 0.0
    %1081 = vmatpush1.msra.mxu0 0.0
    %1082 = vmatprep.subr.mxu0 0.0
    %1083 = vmatpush1.msra.mxu0 0.0
    %1084 = vmatprep.subr.mxu0 0.0
    %1085 = vmatpush1.msra.mxu0 0.0
    %1086 = vmatprep.subr.mxu0 0.0
    %1087 = vmatpush1.msra.mxu0 0.0
    %1088 = vmatprep.mubr.f32.mxu0 0.0
    %v1089 = vand.u32 %v206, 4294901760
    %v1090 = vsub.f32 %v206, %v1089
    %1091 = vmatmul.mubr.f32.gmra.mrb[0].mxu0 %v1090
    %v1092 = vpop.f32.mrb[0].mxu0
    %v1093 = vadd.f32 %v803, %v1092
    %v1094 = vpop.f32.mrb[0].mxu0
    %1095 = vmatprep.mubr.f32.mxu0 0.0
    %v1096 = vand.u32 %v207, 4294901760
    %v1097 = vsub.f32 %v207, %v1096
    %1098 = vmatmul.mubr.f32.gmra.mrb[0].mxu0 %v1097
    %v1099 = vpop.f32.mrb[0].mxu0
    %v1100 = vadd.f32 %v809, %v1099
    %v1101 = vpop.f32.mrb[0].mxu0
    %1102 = vmatprep.mubr.f32.mxu0 0.0
    %v1103 = vand.u32 %v208, 4294901760
    %v1104 = vsub.f32 %v208, %v1103
    %1105 = vmatmul.mubr.f32.gmra.mrb[0].mxu0 %v1104
    %v1106 = vpop.f32.mrb[0].mxu0
    %v1107 = vadd.f32 %v815, %v1106
    %v1108 = vpop.f32.mrb[0].mxu0
    %1109 = vmatprep.mubr.f32.mxu0 0.0
    %v1110 = vand.u32 %v209, 4294901760
    %v1111 = vsub.f32 %v209, %v1110
    %1112 = vmatmul.mubr.f32.gmra.mrb[0].mxu0 %v1111
    %v1113 = vpop.f32.mrb[0].mxu0
    %v1114 = vadd.f32 %v821, %v1113
    %v1115 = vpop.f32.mrb[0].mxu0
    %1116 = vmatprep.mubr.f32.mxu0 0.0
    %v1117 = vand.u32 %v210, 4294901760
    %v1118 = vsub.f32 %v210, %v1117
    %1119 = vmatmul.mubr.f32.gmra.mrb[0].mxu0 %v1118
    %v1120 = vpop.f32.mrb[0].mxu0
    %v1121 = vadd.f32 %v827, %v1120
    %v1122 = vpop.f32.mrb[0].mxu0
    %1123 = vmatprep.mubr.f32.mxu0 0.0
    %v1124 = vand.u32 %v211, 4294901760
    %v1125 = vsub.f32 %v211, %v1124
    %1126 = vmatmul.mubr.f32.gmra.mrb[0].mxu0 %v1125
    %v1127 = vpop.f32.mrb[0].mxu0
    %v1128 = vadd.f32 %v833, %v1127
    %v1129 = vpop.f32.mrb[0].mxu0
    %1130 = vmatprep.mubr.f32.mxu0 0.0
    %v1131 = vand.u32 %v212, 4294901760
    %v1132 = vsub.f32 %v212, %v1131
    %1133 = vmatmul.mubr.f32.gmra.mrb[0].mxu0 %v1132
    %v1134 = vpop.f32.mrb[0].mxu0
    %v1135 = vadd.f32 %v839, %v1134
    %v1136 = vpop.f32.mrb[0].mxu0
    %1137 = vmatprep.mubr.f32.mxu0 0.0
    %v1138 = vand.u32 %v213, 4294901760
    %v1139 = vsub.f32 %v213, %v1138
    %1140 = vmatmul.mubr.f32.gmra.mrb[0].mxu0 %v1139
    %v1141 = vpop.f32.mrb[0].mxu0
    %v1142 = vadd.f32 %v845, %v1141
    %v1143 = vpop.f32.mrb[0].mxu0
    %1144 = vmatprep.mubr.f32.mxu0 0.0
    %v1145 = vand.u32 %v214, 4294901760
    %v1146 = vsub.f32 %v214, %v1145
    %1147 = vmatmul.mubr.f32.gmra.mrb[0].mxu0 %v1146
    %v1148 = vpop.f32.mrb[0].mxu0
    %v1149 = vadd.f32 %v851, %v1148
    %v1150 = vpop.f32.mrb[0].mxu0
    %1151 = vmatprep.mubr.f32.mxu0 0.0
    %v1152 = vand.u32 %v215, 4294901760
    %v1153 = vsub.f32 %v215, %v1152
    %1154 = vmatmul.mubr.f32.gmra.mrb[0].mxu0 %v1153
    %v1155 = vpop.f32.mrb[0].mxu0
    %v1156 = vadd.f32 %v857, %v1155
    %v1157 = vpop.f32.mrb[0].mxu0
    %1158 = vmatprep.mubr.f32.mxu0 0.0
    %v1159 = vand.u32 %v216, 4294901760
    %v1160 = vsub.f32 %v216, %v1159
    %1161 = vmatmul.mubr.f32.gmra.mrb[0].mxu0 %v1160
    %v1162 = vpop.f32.mrb[0].mxu0
    %v1163 = vadd.f32 %v863, %v1162
    %v1164 = vpop.f32.mrb[0].mxu0
    %1165 = vmatprep.mubr.f32.mxu0 0.0
    %v1166 = vand.u32 %v217, 4294901760
    %v1167 = vsub.f32 %v217, %v1166
    %1168 = vmatmul.mubr.f32.gmra.mrb[0].mxu0 %v1167
    %v1169 = vpop.f32.mrb[0].mxu0
    %v1170 = vadd.f32 %v869, %v1169
    %v1171 = vpop.f32.mrb[0].mxu0
    %1172 = vmatprep.mubr.f32.mxu0 0.0
    %v1173 = vand.u32 %v218, 4294901760
    %v1174 = vsub.f32 %v218, %v1173
    %1175 = vmatmul.mubr.f32.gmra.mrb[0].mxu0 %v1174
    %v1176 = vpop.f32.mrb[0].mxu0
    %v1177 = vadd.f32 %v875, %v1176
    %v1178 = vpop.f32.mrb[0].mxu0
    %1179 = vmatprep.mubr.f32.mxu0 0.0
    %v1180 = vand.u32 %v219, 4294901760
    %v1181 = vsub.f32 %v219, %v1180
    %1182 = vmatmul.mubr.f32.gmra.mrb[0].mxu0 %v1181
    %v1183 = vpop.f32.mrb[0].mxu0
    %v1184 = vadd.f32 %v881, %v1183
    %v1185 = vpop.f32.mrb[0].mxu0
    %1186 = vmatprep.mubr.f32.mxu0 0.0
    %v1187 = vand.u32 %v220, 4294901760
    %v1188 = vsub.f32 %v220, %v1187
    %1189 = vmatmul.mubr.f32.gmra.mrb[0].mxu0 %v1188
    %v1190 = vpop.f32.mrb[0].mxu0
    %v1191 = vadd.f32 %v887, %v1190
    %v1192 = vpop.f32.mrb[0].mxu0
    %1193 = vmatprep.mubr.f32.mxu0 0.0
    %v1194 = vand.u32 %v221, 4294901760
    %v1195 = vsub.f32 %v221, %v1194
    %1196 = vmatmul.mubr.f32.gmra.mrb[0].mxu0 %v1195
    %v1197 = vpop.f32.mrb[0].mxu0
    %v1198 = vadd.f32 %v893, %v1197
    %v1199 = vpop.f32.mrb[0].mxu0
    %1200 = vmatprep.mubr.f32.mxu0 0.0
    %v1201 = vand.u32 %v222, 4294901760
    %v1202 = vsub.f32 %v222, %v1201
    %1203 = vmatmul.mubr.f32.gmra.mrb[0].mxu0 %v1202
    %v1204 = vpop.f32.mrb[0].mxu0
    %v1205 = vadd.f32 %v899, %v1204
    %v1206 = vpop.f32.mrb[0].mxu0
    %1207 = vmatprep.mubr.f32.mxu0 0.0
    %v1208 = vand.u32 %v223, 4294901760
    %v1209 = vsub.f32 %v223, %v1208
    %1210 = vmatmul.mubr.f32.gmra.mrb[0].mxu0 %v1209
    %v1211 = vpop.f32.mrb[0].mxu0
    %v1212 = vadd.f32 %v905, %v1211
    %v1213 = vpop.f32.mrb[0].mxu0
    %1214 = vmatprep.mubr.f32.mxu0 0.0
    %v1215 = vand.u32 %v224, 4294901760
    %v1216 = vsub.f32 %v224, %v1215
    %1217 = vmatmul.mubr.f32.gmra.mrb[0].mxu0 %v1216
    %v1218 = vpop.f32.mrb[0].mxu0
    %v1219 = vadd.f32 %v911, %v1218
    %v1220 = vpop.f32.mrb[0].mxu0
    %1221 = vmatprep.mubr.f32.mxu0 0.0
    %v1222 = vand.u32 %v225, 4294901760
    %v1223 = vsub.f32 %v225, %v1222
    %1224 = vmatmul.mubr.f32.gmra.mrb[0].mxu0 %v1223
    %v1225 = vpop.f32.mrb[0].mxu0
    %v1226 = vadd.f32 %v917, %v1225
    %v1227 = vpop.f32.mrb[0].mxu0
    %1228 = vmatprep.mubr.f32.mxu0 0.0
    %v1229 = vand.u32 %v226, 4294901760
    %v1230 = vsub.f32 %v226, %v1229
    %1231 = vmatmul.mubr.f32.gmra.mrb[0].mxu0 %v1230
    %v1232 = vpop.f32.mrb[0].mxu0
    %v1233 = vadd.f32 %v923, %v1232
    %v1234 = vpop.f32.mrb[0].mxu0
    %1235 = vmatprep.mubr.f32.mxu0 0.0
    %v1236 = vand.u32 %v227, 4294901760
    %v1237 = vsub.f32 %v227, %v1236
    %1238 = vmatmul.mubr.f32.gmra.mrb[0].mxu0 %v1237
    %v1239 = vpop.f32.mrb[0].mxu0
    %v1240 = vadd.f32 %v929, %v1239
    %v1241 = vpop.f32.mrb[0].mxu0
    %1242 = vmatprep.mubr.f32.mxu0 0.0
    %v1243 = vand.u32 %v228, 4294901760
    %v1244 = vsub.f32 %v228, %v1243
    %1245 = vmatmul.mubr.f32.gmra.mrb[0].mxu0 %v1244
    %v1246 = vpop.f32.mrb[0].mxu0
    %v1247 = vadd.f32 %v935, %v1246
    %v1248 = vpop.f32.mrb[0].mxu0
    %1249 = vmatprep.mubr.f32.mxu0 0.0
    %v1250 = vand.u32 %v229, 4294901760
    %v1251 = vsub.f32 %v229, %v1250
    %1252 = vmatmul.mubr.f32.gmra.mrb[0].mxu0 %v1251
    %v1253 = vpop.f32.mrb[0].mxu0
    %v1254 = vadd.f32 %v941, %v1253
    %v1255 = vpop.f32.mrb[0].mxu0
    %1256 = vmatprep.mubr.f32.mxu0 0.0
    %v1257 = vand.u32 %v230, 4294901760
    %v1258 = vsub.f32 %v230, %v1257
    %1259 = vmatmul.mubr.f32.gmra.mrb[0].mxu0 %v1258
    %v1260 = vpop.f32.mrb[0].mxu0
    %v1261 = vadd.f32 %v947, %v1260
    %v1262 = vpop.f32.mrb[0].mxu0
    %1263 = vmatprep.mubr.f32.mxu0 0.0
    %v1264 = vand.u32 %v231, 4294901760
    %v1265 = vsub.f32 %v231, %v1264
    %1266 = vmatmul.mubr.f32.gmra.mrb[0].mxu0 %v1265
    %v1267 = vpop.f32.mrb[0].mxu0
    %v1268 = vadd.f32 %v953, %v1267
    %v1269 = vpop.f32.mrb[0].mxu0
    %1270 = vmatprep.mubr.f32.mxu0 0.0
    %v1271 = vand.u32 %v232, 4294901760
    %v1272 = vsub.f32 %v232, %v1271
    %1273 = vmatmul.mubr.f32.gmra.mrb[0].mxu0 %v1272
    %v1274 = vpop.f32.mrb[0].mxu0
    %v1275 = vadd.f32 %v959, %v1274
    %v1276 = vpop.f32.mrb[0].mxu0
    %1277 = vmatprep.mubr.f32.mxu0 0.0
    %v1278 = vand.u32 %v233, 4294901760
    %v1279 = vsub.f32 %v233, %v1278
    %1280 = vmatmul.mubr.f32.gmra.mrb[0].mxu0 %v1279
    %v1281 = vpop.f32.mrb[0].mxu0
    %v1282 = vadd.f32 %v965, %v1281
    %v1283 = vpop.f32.mrb[0].mxu0
    %1284 = vmatprep.mubr.f32.mxu0 0.0
    %v1285 = vand.u32 %v234, 4294901760
    %v1286 = vsub.f32 %v234, %v1285
    %1287 = vmatmul.mubr.f32.gmra.mrb[0].mxu0 %v1286
    %v1288 = vpop.f32.mrb[0].mxu0
    %v1289 = vadd.f32 %v971, %v1288
    %v1290 = vpop.f32.mrb[0].mxu0
    %1291 = vmatprep.mubr.f32.mxu0 0.0
    %v1292 = vand.u32 %v235, 4294901760
    %v1293 = vsub.f32 %v235, %v1292
    %1294 = vmatmul.mubr.f32.gmra.mrb[0].mxu0 %v1293
    %v1295 = vpop.f32.mrb[0].mxu0
    %v1296 = vadd.f32 %v977, %v1295
    %v1297 = vpop.f32.mrb[0].mxu0
    %1298 = vmatprep.mubr.f32.mxu0 0.0
    %v1299 = vand.u32 %v236, 4294901760
    %v1300 = vsub.f32 %v236, %v1299
    %1301 = vmatmul.mubr.f32.gmra.mrb[0].mxu0 %v1300
    %v1302 = vpop.f32.mrb[0].mxu0
    %v1303 = vadd.f32 %v983, %v1302
    %v1304 = vpop.f32.mrb[0].mxu0
    %1305 = vmatprep.mubr.f32.mxu0 0.0
    %v1306 = vand.u32 %v237, 4294901760
    %v1307 = vsub.f32 %v237, %v1306
    %1308 = vmatmul.mubr.f32.gmra.mrb[0].mxu0 %v1307
    %v1309 = vpop.f32.mrb[0].mxu0
    %v1310 = vadd.f32 %v989, %v1309
    %v1311 = vpop.f32.mrb[0].mxu0
    %1312 = vdwg.mxu0
    %1313 = vmatprep.subr.mxu0 0.0
    %v1314 = vand.u32 %v238, 4294901760
    %1315 = vmatpush1.msra.mxu0 %v1314
    %1316 = vmatprep.subr.mxu0 0.0
    %v1317 = vand.u32 %v239, 4294901760
    %1318 = vmatpush1.msra.mxu0 %v1317
    %1319 = vmatprep.subr.mxu0 0.0
    %v1320 = vand.u32 %v240, 4294901760
    %1321 = vmatpush1.msra.mxu0 %v1320
    %1322 = vmatprep.subr.mxu0 0.0
    %v1323 = vand.u32 %v241, 4294901760
    %1324 = vmatpush1.msra.mxu0 %v1323
    %1325 = vmatprep.subr.mxu0 0.0
    %v1326 = vand.u32 %v242, 4294901760
    %1327 = vmatpush1.msra.mxu0 %v1326
    %1328 = vmatprep.subr.mxu0 0.0
    %v1329 = vand.u32 %v243, 4294901760
    %1330 = vmatpush1.msra.mxu0 %v1329
    %1331 = vmatprep.subr.mxu0 0.0
    %v1332 = vand.u32 %v244, 4294901760
    %1333 = vmatpush1.msra.mxu0 %v1332
    %1334 = vmatprep.subr.mxu0 0.0
    %v1335 = vand.u32 %v245, 4294901760
    %1336 = vmatpush1.msra.mxu0 %v1335
    %1337 = vmatprep.subr.mxu0 0.0
    %v1338 = vand.u32 %v246, 4294901760
    %1339 = vmatpush1.msra.mxu0 %v1338
    %1340 = vmatprep.subr.mxu0 0.0
    %v1341 = vand.u32 %v247, 4294901760
    %1342 = vmatpush1.msra.mxu0 %v1341
    %1343 = vmatprep.subr.mxu0 0.0
    %v1344 = vand.u32 %v248, 4294901760
    %1345 = vmatpush1.msra.mxu0 %v1344
    %1346 = vmatprep.subr.mxu0 0.0
    %v1347 = vand.u32 %v249, 4294901760
    %1348 = vmatpush1.msra.mxu0 %v1347
    %1349 = vmatprep.subr.mxu0 0.0
    %v1350 = vand.u32 %v250, 4294901760
    %1351 = vmatpush1.msra.mxu0 %v1350
    %1352 = vmatprep.subr.mxu0 0.0
    %v1353 = vand.u32 %v251, 4294901760
    %1354 = vmatpush1.msra.mxu0 %v1353
    %1355 = vmatprep.subr.mxu0 0.0
    %v1356 = vand.u32 %v252, 4294901760
    %1357 = vmatpush1.msra.mxu0 %v1356
    %1358 = vmatprep.subr.mxu0 0.0
    %v1359 = vand.u32 %v253, 4294901760
    %1360 = vmatpush1.msra.mxu0 %v1359
    %1361 = vmatprep.subr.mxu0 0.0
    %1362 = vmatpush1.msra.mxu0 0.0
    %1363 = vmatprep.subr.mxu0 0.0
    %1364 = vmatpush1.msra.mxu0 0.0
    %1365 = vmatprep.subr.mxu0 0.0
    %1366 = vmatpush1.msra.mxu0 0.0
    %1367 = vmatprep.subr.mxu0 0.0
    %1368 = vmatpush1.msra.mxu0 0.0
    %1369 = vmatprep.subr.mxu0 0.0
    %1370 = vmatpush1.msra.mxu0 0.0
    %1371 = vmatprep.subr.mxu0 0.0
    %1372 = vmatpush1.msra.mxu0 0.0
    %1373 = vmatprep.subr.mxu0 0.0
    %1374 = vmatpush1.msra.mxu0 0.0
    %1375 = vmatprep.subr.mxu0 0.0
    %1376 = vmatpush1.msra.mxu0 0.0
    %1377 = vmatprep.subr.mxu0 0.0
    %1378 = vmatpush1.msra.mxu0 0.0
    %1379 = vmatprep.subr.mxu0 0.0
    %1380 = vmatpush1.msra.mxu0 0.0
    %1381 = vmatprep.subr.mxu0 0.0
    %1382 = vmatpush1.msra.mxu0 0.0
    %1383 = vmatprep.subr.mxu0 0.0
    %1384 = vmatpush1.msra.mxu0 0.0
    %1385 = vmatprep.subr.mxu0 0.0
    %1386 = vmatpush1.msra.mxu0 0.0
    %1387 = vmatprep.subr.mxu0 0.0
    %1388 = vmatpush1.msra.mxu0 0.0
    %1389 = vmatprep.subr.mxu0 0.0
    %1390 = vmatpush1.msra.mxu0 0.0
    %1391 = vmatprep.subr.mxu0 0.0
    %1392 = vmatpush1.msra.mxu0 0.0
    %1393 = vmatprep.mubr.f32.mxu0 0.0
    %v1394 = vand.u32 %v206, 4294901760
    %v1395 = vsub.f32 %v206, %v1394
    %v1396 = vand.u32 %v1395, 4294901760
    %1397 = vmatmul.mubr.f32.gmra.mrb[0].mxu0 %v1396
    %v1398 = vpop.f32.mrb[0].mxu0
    %v1399 = vadd.f32 %v1093, %v1398
    %v1400 = vpop.f32.mrb[0].mxu0
    %1401 = vmatprep.mubr.f32.mxu0 0.0
    %v1402 = vand.u32 %v207, 4294901760
    %v1403 = vsub.f32 %v207, %v1402
    %v1404 = vand.u32 %v1403, 4294901760
    %1405 = vmatmul.mubr.f32.gmra.mrb[0].mxu0 %v1404
    %v1406 = vpop.f32.mrb[0].mxu0
    %v1407 = vadd.f32 %v1100, %v1406
    %v1408 = vpop.f32.mrb[0].mxu0
    %1409 = vmatprep.mubr.f32.mxu0 0.0
    %v1410 = vand.u32 %v208, 4294901760
    %v1411 = vsub.f32 %v208, %v1410
    %v1412 = vand.u32 %v1411, 4294901760
    %1413 = vmatmul.mubr.f32.gmra.mrb[0].mxu0 %v1412
    %v1414 = vpop.f32.mrb[0].mxu0
    %v1415 = vadd.f32 %v1107, %v1414
    %v1416 = vpop.f32.mrb[0].mxu0
    %1417 = vmatprep.mubr.f32.mxu0 0.0
    %v1418 = vand.u32 %v209, 4294901760
    %v1419 = vsub.f32 %v209, %v1418
    %v1420 = vand.u32 %v1419, 4294901760
    %1421 = vmatmul.mubr.f32.gmra.mrb[0].mxu0 %v1420
    %v1422 = vpop.f32.mrb[0].mxu0
    %v1423 = vadd.f32 %v1114, %v1422
    %v1424 = vpop.f32.mrb[0].mxu0
    %1425 = vmatprep.mubr.f32.mxu0 0.0
    %v1426 = vand.u32 %v210, 4294901760
    %v1427 = vsub.f32 %v210, %v1426
    %v1428 = vand.u32 %v1427, 4294901760
    %1429 = vmatmul.mubr.f32.gmra.mrb[0].mxu0 %v1428
    %v1430 = vpop.f32.mrb[0].mxu0
    %v1431 = vadd.f32 %v1121, %v1430
    %v1432 = vpop.f32.mrb[0].mxu0
    %1433 = vmatprep.mubr.f32.mxu0 0.0
    %v1434 = vand.u32 %v211, 4294901760
    %v1435 = vsub.f32 %v211, %v1434
    %v1436 = vand.u32 %v1435, 4294901760
    %1437 = vmatmul.mubr.f32.gmra.mrb[0].mxu0 %v1436
    %v1438 = vpop.f32.mrb[0].mxu0
    %v1439 = vadd.f32 %v1128, %v1438
    %v1440 = vpop.f32.mrb[0].mxu0
    %1441 = vmatprep.mubr.f32.mxu0 0.0
    %v1442 = vand.u32 %v212, 4294901760
    %v1443 = vsub.f32 %v212, %v1442
    %v1444 = vand.u32 %v1443, 4294901760
    %1445 = vmatmul.mubr.f32.gmra.mrb[0].mxu0 %v1444
    %v1446 = vpop.f32.mrb[0].mxu0
    %v1447 = vadd.f32 %v1135, %v1446
    %v1448 = vpop.f32.mrb[0].mxu0
    %1449 = vmatprep.mubr.f32.mxu0 0.0
    %v1450 = vand.u32 %v213, 4294901760
    %v1451 = vsub.f32 %v213, %v1450
    %v1452 = vand.u32 %v1451, 4294901760
    %1453 = vmatmul.mubr.f32.gmra.mrb[0].mxu0 %v1452
    %v1454 = vpop.f32.mrb[0].mxu0
    %v1455 = vadd.f32 %v1142, %v1454
    %v1456 = vpop.f32.mrb[0].mxu0
    %1457 = vmatprep.mubr.f32.mxu0 0.0
    %v1458 = vand.u32 %v214, 4294901760
    %v1459 = vsub.f32 %v214, %v1458
    %v1460 = vand.u32 %v1459, 4294901760
    %1461 = vmatmul.mubr.f32.gmra.mrb[0].mxu0 %v1460
    %v1462 = vpop.f32.mrb[0].mxu0
    %v1463 = vadd.f32 %v1149, %v1462
    %v1464 = vpop.f32.mrb[0].mxu0
    %1465 = vmatprep.mubr.f32.mxu0 0.0
    %v1466 = vand.u32 %v215, 4294901760
    %v1467 = vsub.f32 %v215, %v1466
    %v1468 = vand.u32 %v1467, 4294901760
    %1469 = vmatmul.mubr.f32.gmra.mrb[0].mxu0 %v1468
    %v1470 = vpop.f32.mrb[0].mxu0
    %v1471 = vadd.f32 %v1156, %v1470
    %v1472 = vpop.f32.mrb[0].mxu0
    %1473 = vmatprep.mubr.f32.mxu0 0.0
    %v1474 = vand.u32 %v216, 4294901760
    %v1475 = vsub.f32 %v216, %v1474
    %v1476 = vand.u32 %v1475, 4294901760
    %1477 = vmatmul.mubr.f32.gmra.mrb[0].mxu0 %v1476
    %v1478 = vpop.f32.mrb[0].mxu0
    %v1479 = vadd.f32 %v1163, %v1478
    %v1480 = vpop.f32.mrb[0].mxu0
    %1481 = vmatprep.mubr.f32.mxu0 0.0
    %v1482 = vand.u32 %v217, 4294901760
    %v1483 = vsub.f32 %v217, %v1482
    %v1484 = vand.u32 %v1483, 4294901760
    %1485 = vmatmul.mubr.f32.gmra.mrb[0].mxu0 %v1484
    %v1486 = vpop.f32.mrb[0].mxu0
    %v1487 = vadd.f32 %v1170, %v1486
    %v1488 = vpop.f32.mrb[0].mxu0
    %1489 = vmatprep.mubr.f32.mxu0 0.0
    %v1490 = vand.u32 %v218, 4294901760
    %v1491 = vsub.f32 %v218, %v1490
    %v1492 = vand.u32 %v1491, 4294901760
    %1493 = vmatmul.mubr.f32.gmra.mrb[0].mxu0 %v1492
    %v1494 = vpop.f32.mrb[0].mxu0
    %v1495 = vadd.f32 %v1177, %v1494
    %v1496 = vpop.f32.mrb[0].mxu0
    %1497 = vmatprep.mubr.f32.mxu0 0.0
    %v1498 = vand.u32 %v219, 4294901760
    %v1499 = vsub.f32 %v219, %v1498
    %v1500 = vand.u32 %v1499, 4294901760
    %1501 = vmatmul.mubr.f32.gmra.mrb[0].mxu0 %v1500
    %v1502 = vpop.f32.mrb[0].mxu0
    %v1503 = vadd.f32 %v1184, %v1502
    %v1504 = vpop.f32.mrb[0].mxu0
    %1505 = vmatprep.mubr.f32.mxu0 0.0
    %v1506 = vand.u32 %v220, 4294901760
    %v1507 = vsub.f32 %v220, %v1506
    %v1508 = vand.u32 %v1507, 4294901760
    %1509 = vmatmul.mubr.f32.gmra.mrb[0].mxu0 %v1508
    %v1510 = vpop.f32.mrb[0].mxu0
    %v1511 = vadd.f32 %v1191, %v1510
    %v1512 = vpop.f32.mrb[0].mxu0
    %1513 = vmatprep.mubr.f32.mxu0 0.0
    %v1514 = vand.u32 %v221, 4294901760
    %v1515 = vsub.f32 %v221, %v1514
    %v1516 = vand.u32 %v1515, 4294901760
    %1517 = vmatmul.mubr.f32.gmra.mrb[0].mxu0 %v1516
    %v1518 = vpop.f32.mrb[0].mxu0
    %v1519 = vadd.f32 %v1198, %v1518
    %v1520 = vpop.f32.mrb[0].mxu0
    %1521 = vmatprep.mubr.f32.mxu0 0.0
    %v1522 = vand.u32 %v222, 4294901760
    %v1523 = vsub.f32 %v222, %v1522
    %v1524 = vand.u32 %v1523, 4294901760
    %1525 = vmatmul.mubr.f32.gmra.mrb[0].mxu0 %v1524
    %v1526 = vpop.f32.mrb[0].mxu0
    %v1527 = vadd.f32 %v1205, %v1526
    %v1528 = vpop.f32.mrb[0].mxu0
    %1529 = vmatprep.mubr.f32.mxu0 0.0
    %v1530 = vand.u32 %v223, 4294901760
    %v1531 = vsub.f32 %v223, %v1530
    %v1532 = vand.u32 %v1531, 4294901760
    %1533 = vmatmul.mubr.f32.gmra.mrb[0].mxu0 %v1532
    %v1534 = vpop.f32.mrb[0].mxu0
    %v1535 = vadd.f32 %v1212, %v1534
    %v1536 = vpop.f32.mrb[0].mxu0
    %1537 = vmatprep.mubr.f32.mxu0 0.0
    %v1538 = vand.u32 %v224, 4294901760
    %v1539 = vsub.f32 %v224, %v1538
    %v1540 = vand.u32 %v1539, 4294901760
    %1541 = vmatmul.mubr.f32.gmra.mrb[0].mxu0 %v1540
    %v1542 = vpop.f32.mrb[0].mxu0
    %v1543 = vadd.f32 %v1219, %v1542
    %v1544 = vpop.f32.mrb[0].mxu0
    %1545 = vmatprep.mubr.f32.mxu0 0.0
    %v1546 = vand.u32 %v225, 4294901760
    %v1547 = vsub.f32 %v225, %v1546
    %v1548 = vand.u32 %v1547, 4294901760
    %1549 = vmatmul.mubr.f32.gmra.mrb[0].mxu0 %v1548
    %v1550 = vpop.f32.mrb[0].mxu0
    %v1551 = vadd.f32 %v1226, %v1550
    %v1552 = vpop.f32.mrb[0].mxu0
    %1553 = vmatprep.mubr.f32.mxu0 0.0
    %v1554 = vand.u32 %v226, 4294901760
    %v1555 = vsub.f32 %v226, %v1554
    %v1556 = vand.u32 %v1555, 4294901760
    %1557 = vmatmul.mubr.f32.gmra.mrb[0].mxu0 %v1556
    %v1558 = vpop.f32.mrb[0].mxu0
    %v1559 = vadd.f32 %v1233, %v1558
    %v1560 = vpop.f32.mrb[0].mxu0
    %1561 = vmatprep.mubr.f32.mxu0 0.0
    %v1562 = vand.u32 %v227, 4294901760
    %v1563 = vsub.f32 %v227, %v1562
    %v1564 = vand.u32 %v1563, 4294901760
    %1565 = vmatmul.mubr.f32.gmra.mrb[0].mxu0 %v1564
    %v1566 = vpop.f32.mrb[0].mxu0
    %v1567 = vadd.f32 %v1240, %v1566
    %v1568 = vpop.f32.mrb[0].mxu0
    %1569 = vmatprep.mubr.f32.mxu0 0.0
    %v1570 = vand.u32 %v228, 4294901760
    %v1571 = vsub.f32 %v228, %v1570
    %v1572 = vand.u32 %v1571, 4294901760
    %1573 = vmatmul.mubr.f32.gmra.mrb[0].mxu0 %v1572
    %v1574 = vpop.f32.mrb[0].mxu0
    %v1575 = vadd.f32 %v1247, %v1574
    %v1576 = vpop.f32.mrb[0].mxu0
    %1577 = vmatprep.mubr.f32.mxu0 0.0
    %v1578 = vand.u32 %v229, 4294901760
    %v1579 = vsub.f32 %v229, %v1578
    %v1580 = vand.u32 %v1579, 4294901760
    %1581 = vmatmul.mubr.f32.gmra.mrb[0].mxu0 %v1580
    %v1582 = vpop.f32.mrb[0].mxu0
    %v1583 = vadd.f32 %v1254, %v1582
    %v1584 = vpop.f32.mrb[0].mxu0
    %1585 = vmatprep.mubr.f32.mxu0 0.0
    %v1586 = vand.u32 %v230, 4294901760
    %v1587 = vsub.f32 %v230, %v1586
    %v1588 = vand.u32 %v1587, 4294901760
    %1589 = vmatmul.mubr.f32.gmra.mrb[0].mxu0 %v1588
    %v1590 = vpop.f32.mrb[0].mxu0
    %v1591 = vadd.f32 %v1261, %v1590
    %v1592 = vpop.f32.mrb[0].mxu0
    %1593 = vmatprep.mubr.f32.mxu0 0.0
    %v1594 = vand.u32 %v231, 4294901760
    %v1595 = vsub.f32 %v231, %v1594
    %v1596 = vand.u32 %v1595, 4294901760
    %1597 = vmatmul.mubr.f32.gmra.mrb[0].mxu0 %v1596
    %v1598 = vpop.f32.mrb[0].mxu0
    %v1599 = vadd.f32 %v1268, %v1598
    %v1600 = vpop.f32.mrb[0].mxu0
    %1601 = vmatprep.mubr.f32.mxu0 0.0
    %v1602 = vand.u32 %v232, 4294901760
    %v1603 = vsub.f32 %v232, %v1602
    %v1604 = vand.u32 %v1603, 4294901760
    %1605 = vmatmul.mubr.f32.gmra.mrb[0].mxu0 %v1604
    %v1606 = vpop.f32.mrb[0].mxu0
    %v1607 = vadd.f32 %v1275, %v1606
    %v1608 = vpop.f32.mrb[0].mxu0
    %1609 = vmatprep.mubr.f32.mxu0 0.0
    %v1610 = vand.u32 %v233, 4294901760
    %v1611 = vsub.f32 %v233, %v1610
    %v1612 = vand.u32 %v1611, 4294901760
    %1613 = vmatmul.mubr.f32.gmra.mrb[0].mxu0 %v1612
    %v1614 = vpop.f32.mrb[0].mxu0
    %v1615 = vadd.f32 %v1282, %v1614
    %v1616 = vpop.f32.mrb[0].mxu0
    %1617 = vmatprep.mubr.f32.mxu0 0.0
    %v1618 = vand.u32 %v234, 4294901760
    %v1619 = vsub.f32 %v234, %v1618
    %v1620 = vand.u32 %v1619, 4294901760
    %1621 = vmatmul.mubr.f32.gmra.mrb[0].mxu0 %v1620
    %v1622 = vpop.f32.mrb[0].mxu0
    %v1623 = vadd.f32 %v1289, %v1622
    %v1624 = vpop.f32.mrb[0].mxu0
    %1625 = vmatprep.mubr.f32.mxu0 0.0
    %v1626 = vand.u32 %v235, 4294901760
    %v1627 = vsub.f32 %v235, %v1626
    %v1628 = vand.u32 %v1627, 4294901760
    %1629 = vmatmul.mubr.f32.gmra.mrb[0].mxu0 %v1628
    %v1630 = vpop.f32.mrb[0].mxu0
    %v1631 = vadd.f32 %v1296, %v1630
    %v1632 = vpop.f32.mrb[0].mxu0
    %1633 = vmatprep.mubr.f32.mxu0 0.0
    %v1634 = vand.u32 %v236, 4294901760
    %v1635 = vsub.f32 %v236, %v1634
    %v1636 = vand.u32 %v1635, 4294901760
    %1637 = vmatmul.mubr.f32.gmra.mrb[0].mxu0 %v1636
    %v1638 = vpop.f32.mrb[0].mxu0
    %v1639 = vadd.f32 %v1303, %v1638
    %v1640 = vpop.f32.mrb[0].mxu0
    %1641 = vmatprep.mubr.f32.mxu0 0.0
    %v1642 = vand.u32 %v237, 4294901760
    %v1643 = vsub.f32 %v237, %v1642
    %v1644 = vand.u32 %v1643, 4294901760
    %1645 = vmatmul.mubr.f32.gmra.mrb[0].mxu0 %v1644
    %v1646 = vpop.f32.mrb[0].mxu0
    %v1647 = vadd.f32 %v1310, %v1646
    %v1648 = vpop.f32.mrb[0].mxu0
    %1649 = vdwg.mxu0
    %1650 = vmatprep.subr.mxu0 0.0
    %v1651 = vand.u32 %v238, 4294901760
    %v1652 = vsub.f32 %v238, %v1651
    %v1653 = vand.u32 %v1652, 4294901760
    %1654 = vmatpush1.msra.mxu0 %v1653
    %1655 = vmatprep.subr.mxu0 0.0
    %v1656 = vand.u32 %v239, 4294901760
    %v1657 = vsub.f32 %v239, %v1656
    %v1658 = vand.u32 %v1657, 4294901760
    %1659 = vmatpush1.msra.mxu0 %v1658
    %1660 = vmatprep.subr.mxu0 0.0
    %v1661 = vand.u32 %v240, 4294901760
    %v1662 = vsub.f32 %v240, %v1661
    %v1663 = vand.u32 %v1662, 4294901760
    %1664 = vmatpush1.msra.mxu0 %v1663
    %1665 = vmatprep.subr.mxu0 0.0
    %v1666 = vand.u32 %v241, 4294901760
    %v1667 = vsub.f32 %v241, %v1666
    %v1668 = vand.u32 %v1667, 4294901760
    %1669 = vmatpush1.msra.mxu0 %v1668
    %1670 = vmatprep.subr.mxu0 0.0
    %v1671 = vand.u32 %v242, 4294901760
    %v1672 = vsub.f32 %v242, %v1671
    %v1673 = vand.u32 %v1672, 4294901760
    %1674 = vmatpush1.msra.mxu0 %v1673
    %1675 = vmatprep.subr.mxu0 0.0
    %v1676 = vand.u32 %v243, 4294901760
    %v1677 = vsub.f32 %v243, %v1676
    %v1678 = vand.u32 %v1677, 4294901760
    %1679 = vmatpush1.msra.mxu0 %v1678
    %1680 = vmatprep.subr.mxu0 0.0
    %v1681 = vand.u32 %v244, 4294901760
    %v1682 = vsub.f32 %v244, %v1681
    %v1683 = vand.u32 %v1682, 4294901760
    %1684 = vmatpush1.msra.mxu0 %v1683
    %1685 = vmatprep.subr.mxu0 0.0
    %v1686 = vand.u32 %v245, 4294901760
    %v1687 = vsub.f32 %v245, %v1686
    %v1688 = vand.u32 %v1687, 4294901760
    %1689 = vmatpush1.msra.mxu0 %v1688
    %1690 = vmatprep.subr.mxu0 0.0
    %v1691 = vand.u32 %v246, 4294901760
    %v1692 = vsub.f32 %v246, %v1691
    %v1693 = vand.u32 %v1692, 4294901760
    %1694 = vmatpush1.msra.mxu0 %v1693
    %1695 = vmatprep.subr.mxu0 0.0
    %v1696 = vand.u32 %v247, 4294901760
    %v1697 = vsub.f32 %v247, %v1696
    %v1698 = vand.u32 %v1697, 4294901760
    %1699 = vmatpush1.msra.mxu0 %v1698
    %1700 = vmatprep.subr.mxu0 0.0
    %v1701 = vand.u32 %v248, 4294901760
    %v1702 = vsub.f32 %v248, %v1701
    %v1703 = vand.u32 %v1702, 4294901760
    %1704 = vmatpush1.msra.mxu0 %v1703
    %1705 = vmatprep.subr.mxu0 0.0
    %v1706 = vand.u32 %v249, 4294901760
    %v1707 = vsub.f32 %v249, %v1706
    %v1708 = vand.u32 %v1707, 4294901760
    %1709 = vmatpush1.msra.mxu0 %v1708
    %1710 = vmatprep.subr.mxu0 0.0
    %v1711 = vand.u32 %v250, 4294901760
    %v1712 = vsub.f32 %v250, %v1711
    %v1713 = vand.u32 %v1712, 4294901760
    %1714 = vmatpush1.msra.mxu0 %v1713
    %1715 = vmatprep.subr.mxu0 0.0
    %v1716 = vand.u32 %v251, 4294901760
    %v1717 = vsub.f32 %v251, %v1716
    %v1718 = vand.u32 %v1717, 4294901760
    %1719 = vmatpush1.msra.mxu0 %v1718
    %1720 = vmatprep.subr.mxu0 0.0
    %v1721 = vand.u32 %v252, 4294901760
    %v1722 = vsub.f32 %v252, %v1721
    %v1723 = vand.u32 %v1722, 4294901760
    %1724 = vmatpush1.msra.mxu0 %v1723
    %1725 = vmatprep.subr.mxu0 0.0
    %v1726 = vand.u32 %v253, 4294901760
    %v1727 = vsub.f32 %v253, %v1726
    %v1728 = vand.u32 %v1727, 4294901760
    %1729 = vmatpush1.msra.mxu0 %v1728
    %1730 = vmatprep.subr.mxu0 0.0
    %1731 = vmatpush1.msra.mxu0 0.0
    %1732 = vmatprep.subr.mxu0 0.0
    %1733 = vmatpush1.msra.mxu0 0.0
    %1734 = vmatprep.subr.mxu0 0.0
    %1735 = vmatpush1.msra.mxu0 0.0
    %1736 = vmatprep.subr.mxu0 0.0
    %1737 = vmatpush1.msra.mxu0 0.0
    %1738 = vmatprep.subr.mxu0 0.0
    %1739 = vmatpush1.msra.mxu0 0.0
    %1740 = vmatprep.subr.mxu0 0.0
    %1741 = vmatpush1.msra.mxu0 0.0
    %1742 = vmatprep.subr.mxu0 0.0
    %1743 = vmatpush1.msra.mxu0 0.0
    %1744 = vmatprep.subr.mxu0 0.0
    %1745 = vmatpush1.msra.mxu0 0.0
    %1746 = vmatprep.subr.mxu0 0.0
    %1747 = vmatpush1.msra.mxu0 0.0
    %1748 = vmatprep.subr.mxu0 0.0
    %1749 = vmatpush1.msra.mxu0 0.0
    %1750 = vmatprep.subr.mxu0 0.0
    %1751 = vmatpush1.msra.mxu0 0.0
    %1752 = vmatprep.subr.mxu0 0.0
    %1753 = vmatpush1.msra.mxu0 0.0
    %1754 = vmatprep.subr.mxu0 0.0
    %1755 = vmatpush1.msra.mxu0 0.0
    %1756 = vmatprep.subr.mxu0 0.0
    %1757 = vmatpush1.msra.mxu0 0.0
    %1758 = vmatprep.subr.mxu0 0.0
    %1759 = vmatpush1.msra.mxu0 0.0
    %1760 = vmatprep.subr.mxu0 0.0
    %1761 = vmatpush1.msra.mxu0 0.0
    %1762 = vmatprep.mubr.f32.mxu0 0.0
    %v1763 = vand.u32 %v206, 4294901760
    %1764 = vmatmul.mubr.f32.gmra.mrb[0].mxu0 %v1763
    %v1765 = vpop.f32.mrb[0].mxu0
    %v1766 = vadd.f32 %v1399, %v1765
    %v1767 = vpop.f32.mrb[0].mxu0
    %1768 = vmatprep.mubr.f32.mxu0 0.0
    %v1769 = vand.u32 %v207, 4294901760
    %1770 = vmatmul.mubr.f32.gmra.mrb[0].mxu0 %v1769
    %v1771 = vpop.f32.mrb[0].mxu0
    %v1772 = vadd.f32 %v1407, %v1771
    %v1773 = vpop.f32.mrb[0].mxu0
    %1774 = vmatprep.mubr.f32.mxu0 0.0
    %v1775 = vand.u32 %v208, 4294901760
    %1776 = vmatmul.mubr.f32.gmra.mrb[0].mxu0 %v1775
    %v1777 = vpop.f32.mrb[0].mxu0
    %v1778 = vadd.f32 %v1415, %v1777
    %v1779 = vpop.f32.mrb[0].mxu0
    %1780 = vmatprep.mubr.f32.mxu0 0.0
    %v1781 = vand.u32 %v209, 4294901760
    %1782 = vmatmul.mubr.f32.gmra.mrb[0].mxu0 %v1781
    %v1783 = vpop.f32.mrb[0].mxu0
    %v1784 = vadd.f32 %v1423, %v1783
    %v1785 = vpop.f32.mrb[0].mxu0
    %1786 = vmatprep.mubr.f32.mxu0 0.0
    %v1787 = vand.u32 %v210, 4294901760
    %1788 = vmatmul.mubr.f32.gmra.mrb[0].mxu0 %v1787
    %v1789 = vpop.f32.mrb[0].mxu0
    %v1790 = vadd.f32 %v1431, %v1789
    %v1791 = vpop.f32.mrb[0].mxu0
    %1792 = vmatprep.mubr.f32.mxu0 0.0
    %v1793 = vand.u32 %v211, 4294901760
    %1794 = vmatmul.mubr.f32.gmra.mrb[0].mxu0 %v1793
    %v1795 = vpop.f32.mrb[0].mxu0
    %v1796 = vadd.f32 %v1439, %v1795
    %v1797 = vpop.f32.mrb[0].mxu0
    %1798 = vmatprep.mubr.f32.mxu0 0.0
    %v1799 = vand.u32 %v212, 4294901760
    %1800 = vmatmul.mubr.f32.gmra.mrb[0].mxu0 %v1799
    %v1801 = vpop.f32.mrb[0].mxu0
    %v1802 = vadd.f32 %v1447, %v1801
    %v1803 = vpop.f32.mrb[0].mxu0
    %1804 = vmatprep.mubr.f32.mxu0 0.0
    %v1805 = vand.u32 %v213, 4294901760
    %1806 = vmatmul.mubr.f32.gmra.mrb[0].mxu0 %v1805
    %v1807 = vpop.f32.mrb[0].mxu0
    %v1808 = vadd.f32 %v1455, %v1807
    %v1809 = vpop.f32.mrb[0].mxu0
    %1810 = vmatprep.mubr.f32.mxu0 0.0
    %v1811 = vand.u32 %v214, 4294901760
    %1812 = vmatmul.mubr.f32.gmra.mrb[0].mxu0 %v1811
    %v1813 = vpop.f32.mrb[0].mxu0
    %v1814 = vadd.f32 %v1463, %v1813
    %v1815 = vpop.f32.mrb[0].mxu0
    %1816 = vmatprep.mubr.f32.mxu0 0.0
    %v1817 = vand.u32 %v215, 4294901760
    %1818 = vmatmul.mubr.f32.gmra.mrb[0].mxu0 %v1817
    %v1819 = vpop.f32.mrb[0].mxu0
    %v1820 = vadd.f32 %v1471, %v1819
    %v1821 = vpop.f32.mrb[0].mxu0
    %1822 = vmatprep.mubr.f32.mxu0 0.0
    %v1823 = vand.u32 %v216, 4294901760
    %1824 = vmatmul.mubr.f32.gmra.mrb[0].mxu0 %v1823
    %v1825 = vpop.f32.mrb[0].mxu0
    %v1826 = vadd.f32 %v1479, %v1825
    %v1827 = vpop.f32.mrb[0].mxu0
    %1828 = vmatprep.mubr.f32.mxu0 0.0
    %v1829 = vand.u32 %v217, 4294901760
    %1830 = vmatmul.mubr.f32.gmra.mrb[0].mxu0 %v1829
    %v1831 = vpop.f32.mrb[0].mxu0
    %v1832 = vadd.f32 %v1487, %v1831
    %v1833 = vpop.f32.mrb[0].mxu0
    %1834 = vmatprep.mubr.f32.mxu0 0.0
    %v1835 = vand.u32 %v218, 4294901760
    %1836 = vmatmul.mubr.f32.gmra.mrb[0].mxu0 %v1835
    %v1837 = vpop.f32.mrb[0].mxu0
    %v1838 = vadd.f32 %v1495, %v1837
    %v1839 = vpop.f32.mrb[0].mxu0
    %1840 = vmatprep.mubr.f32.mxu0 0.0
    %v1841 = vand.u32 %v219, 4294901760
    %1842 = vmatmul.mubr.f32.gmra.mrb[0].mxu0 %v1841
    %v1843 = vpop.f32.mrb[0].mxu0
    %v1844 = vadd.f32 %v1503, %v1843
    %v1845 = vpop.f32.mrb[0].mxu0
    %1846 = vmatprep.mubr.f32.mxu0 0.0
    %v1847 = vand.u32 %v220, 4294901760
    %1848 = vmatmul.mubr.f32.gmra.mrb[0].mxu0 %v1847
    %v1849 = vpop.f32.mrb[0].mxu0
    %v1850 = vadd.f32 %v1511, %v1849
    %v1851 = vpop.f32.mrb[0].mxu0
    %1852 = vmatprep.mubr.f32.mxu0 0.0
    %v1853 = vand.u32 %v221, 4294901760
    %1854 = vmatmul.mubr.f32.gmra.mrb[0].mxu0 %v1853
    %v1855 = vpop.f32.mrb[0].mxu0
    %v1856 = vadd.f32 %v1519, %v1855
    %v1857 = vpop.f32.mrb[0].mxu0
    %1858 = vmatprep.mubr.f32.mxu0 0.0
    %v1859 = vand.u32 %v222, 4294901760
    %1860 = vmatmul.mubr.f32.gmra.mrb[0].mxu0 %v1859
    %v1861 = vpop.f32.mrb[0].mxu0
    %v1862 = vadd.f32 %v1527, %v1861
    %v1863 = vpop.f32.mrb[0].mxu0
    %1864 = vmatprep.mubr.f32.mxu0 0.0
    %v1865 = vand.u32 %v223, 4294901760
    %1866 = vmatmul.mubr.f32.gmra.mrb[0].mxu0 %v1865
    %v1867 = vpop.f32.mrb[0].mxu0
    %v1868 = vadd.f32 %v1535, %v1867
    %v1869 = vpop.f32.mrb[0].mxu0
    %1870 = vmatprep.mubr.f32.mxu0 0.0
    %v1871 = vand.u32 %v224, 4294901760
    %1872 = vmatmul.mubr.f32.gmra.mrb[0].mxu0 %v1871
    %v1873 = vpop.f32.mrb[0].mxu0
    %v1874 = vadd.f32 %v1543, %v1873
    %v1875 = vpop.f32.mrb[0].mxu0
    %1876 = vmatprep.mubr.f32.mxu0 0.0
    %v1877 = vand.u32 %v225, 4294901760
    %1878 = vmatmul.mubr.f32.gmra.mrb[0].mxu0 %v1877
    %v1879 = vpop.f32.mrb[0].mxu0
    %v1880 = vadd.f32 %v1551, %v1879
    %v1881 = vpop.f32.mrb[0].mxu0
    %1882 = vmatprep.mubr.f32.mxu0 0.0
    %v1883 = vand.u32 %v226, 4294901760
    %1884 = vmatmul.mubr.f32.gmra.mrb[0].mxu0 %v1883
    %v1885 = vpop.f32.mrb[0].mxu0
    %v1886 = vadd.f32 %v1559, %v1885
    %v1887 = vpop.f32.mrb[0].mxu0
    %1888 = vmatprep.mubr.f32.mxu0 0.0
    %v1889 = vand.u32 %v227, 4294901760
    %1890 = vmatmul.mubr.f32.gmra.mrb[0].mxu0 %v1889
    %v1891 = vpop.f32.mrb[0].mxu0
    %v1892 = vadd.f32 %v1567, %v1891
    %v1893 = vpop.f32.mrb[0].mxu0
    %1894 = vmatprep.mubr.f32.mxu0 0.0
    %v1895 = vand.u32 %v228, 4294901760
    %1896 = vmatmul.mubr.f32.gmra.mrb[0].mxu0 %v1895
    %v1897 = vpop.f32.mrb[0].mxu0
    %v1898 = vadd.f32 %v1575, %v1897
    %v1899 = vpop.f32.mrb[0].mxu0
    %1900 = vmatprep.mubr.f32.mxu0 0.0
    %v1901 = vand.u32 %v229, 4294901760
    %1902 = vmatmul.mubr.f32.gmra.mrb[0].mxu0 %v1901
    %v1903 = vpop.f32.mrb[0].mxu0
    %v1904 = vadd.f32 %v1583, %v1903
    %v1905 = vpop.f32.mrb[0].mxu0
    %1906 = vmatprep.mubr.f32.mxu0 0.0
    %v1907 = vand.u32 %v230, 4294901760
    %1908 = vmatmul.mubr.f32.gmra.mrb[0].mxu0 %v1907
    %v1909 = vpop.f32.mrb[0].mxu0
    %v1910 = vadd.f32 %v1591, %v1909
    %v1911 = vpop.f32.mrb[0].mxu0
    %1912 = vmatprep.mubr.f32.mxu0 0.0
    %v1913 = vand.u32 %v231, 4294901760
    %1914 = vmatmul.mubr.f32.gmra.mrb[0].mxu0 %v1913
    %v1915 = vpop.f32.mrb[0].mxu0
    %v1916 = vadd.f32 %v1599, %v1915
    %v1917 = vpop.f32.mrb[0].mxu0
    %1918 = vmatprep.mubr.f32.mxu0 0.0
    %v1919 = vand.u32 %v232, 4294901760
    %1920 = vmatmul.mubr.f32.gmra.mrb[0].mxu0 %v1919
    %v1921 = vpop.f32.mrb[0].mxu0
    %v1922 = vadd.f32 %v1607, %v1921
    %v1923 = vpop.f32.mrb[0].mxu0
    %1924 = vmatprep.mubr.f32.mxu0 0.0
    %v1925 = vand.u32 %v233, 4294901760
    %1926 = vmatmul.mubr.f32.gmra.mrb[0].mxu0 %v1925
    %v1927 = vpop.f32.mrb[0].mxu0
    %v1928 = vadd.f32 %v1615, %v1927
    %v1929 = vpop.f32.mrb[0].mxu0
    %1930 = vmatprep.mubr.f32.mxu0 0.0
    %v1931 = vand.u32 %v234, 4294901760
    %1932 = vmatmul.mubr.f32.gmra.mrb[0].mxu0 %v1931
    %v1933 = vpop.f32.mrb[0].mxu0
    %v1934 = vadd.f32 %v1623, %v1933
    %v1935 = vpop.f32.mrb[0].mxu0
    %1936 = vmatprep.mubr.f32.mxu0 0.0
    %v1937 = vand.u32 %v235, 4294901760
    %1938 = vmatmul.mubr.f32.gmra.mrb[0].mxu0 %v1937
    %v1939 = vpop.f32.mrb[0].mxu0
    %v1940 = vadd.f32 %v1631, %v1939
    %v1941 = vpop.f32.mrb[0].mxu0
    %1942 = vmatprep.mubr.f32.mxu0 0.0
    %v1943 = vand.u32 %v236, 4294901760
    %1944 = vmatmul.mubr.f32.gmra.mrb[0].mxu0 %v1943
    %v1945 = vpop.f32.mrb[0].mxu0
    %v1946 = vadd.f32 %v1639, %v1945
    %v1947 = vpop.f32.mrb[0].mxu0
    %1948 = vmatprep.mubr.f32.mxu0 0.0
    %v1949 = vand.u32 %v237, 4294901760
    %1950 = vmatmul.mubr.f32.gmra.mrb[0].mxu0 %v1949
    %v1951 = vpop.f32.mrb[0].mxu0
    %v1952 = vadd.f32 %v1647, %v1951
    %v1953 = vpop.f32.mrb[0].mxu0
    %1954 = vdwg.mxu0
    %1955 = vmatprep.subr.mxu0 0.0
    %v1956 = vand.u32 %v238, 4294901760
    %1957 = vmatpush1.msra.mxu0 %v1956
    %1958 = vmatprep.subr.mxu0 0.0
    %v1959 = vand.u32 %v239, 4294901760
    %1960 = vmatpush1.msra.mxu0 %v1959
    %1961 = vmatprep.subr.mxu0 0.0
    %v1962 = vand.u32 %v240, 4294901760
    %1963 = vmatpush1.msra.mxu0 %v1962
    %1964 = vmatprep.subr.mxu0 0.0
    %v1965 = vand.u32 %v241, 4294901760
    %1966 = vmatpush1.msra.mxu0 %v1965
    %1967 = vmatprep.subr.mxu0 0.0
    %v1968 = vand.u32 %v242, 4294901760
    %1969 = vmatpush1.msra.mxu0 %v1968
    %1970 = vmatprep.subr.mxu0 0.0
    %v1971 = vand.u32 %v243, 4294901760
    %1972 = vmatpush1.msra.mxu0 %v1971
    %1973 = vmatprep.subr.mxu0 0.0
    %v1974 = vand.u32 %v244, 4294901760
    %1975 = vmatpush1.msra.mxu0 %v1974
    %1976 = vmatprep.subr.mxu0 0.0
    %v1977 = vand.u32 %v245, 4294901760
    %1978 = vmatpush1.msra.mxu0 %v1977
    %1979 = vmatprep.subr.mxu0 0.0
    %v1980 = vand.u32 %v246, 4294901760
    %1981 = vmatpush1.msra.mxu0 %v1980
    %1982 = vmatprep.subr.mxu0 0.0
    %v1983 = vand.u32 %v247, 4294901760
    %1984 = vmatpush1.msra.mxu0 %v1983
    %1985 = vmatprep.subr.mxu0 0.0
    %v1986 = vand.u32 %v248, 4294901760
    %1987 = vmatpush1.msra.mxu0 %v1986
    %1988 = vmatprep.subr.mxu0 0.0
    %v1989 = vand.u32 %v249, 4294901760
    %1990 = vmatpush1.msra.mxu0 %v1989
    %1991 = vmatprep.subr.mxu0 0.0
    %v1992 = vand.u32 %v250, 4294901760
    %1993 = vmatpush1.msra.mxu0 %v1992
    %1994 = vmatprep.subr.mxu0 0.0
    %v1995 = vand.u32 %v251, 4294901760
    %1996 = vmatpush1.msra.mxu0 %v1995
    %1997 = vmatprep.subr.mxu0 0.0
    %v1998 = vand.u32 %v252, 4294901760
    %1999 = vmatpush1.msra.mxu0 %v1998
    %2000 = vmatprep.subr.mxu0 0.0
    %v2001 = vand.u32 %v253, 4294901760
    %2002 = vmatpush1.msra.mxu0 %v2001
    %2003 = vmatprep.subr.mxu0 0.0
    %2004 = vmatpush1.msra.mxu0 0.0
    %2005 = vmatprep.subr.mxu0 0.0
    %2006 = vmatpush1.msra.mxu0 0.0
    %2007 = vmatprep.subr.mxu0 0.0
    %2008 = vmatpush1.msra.mxu0 0.0
    %2009 = vmatprep.subr.mxu0 0.0
    %2010 = vmatpush1.msra.mxu0 0.0
    %2011 = vmatprep.subr.mxu0 0.0
    %2012 = vmatpush1.msra.mxu0 0.0
    %2013 = vmatprep.subr.mxu0 0.0
    %2014 = vmatpush1.msra.mxu0 0.0
    %2015 = vmatprep.subr.mxu0 0.0
    %2016 = vmatpush1.msra.mxu0 0.0
    %2017 = vmatprep.subr.mxu0 0.0
    %2018 = vmatpush1.msra.mxu0 0.0
    %2019 = vmatprep.subr.mxu0 0.0
    %2020 = vmatpush1.msra.mxu0 0.0
    %2021 = vmatprep.subr.mxu0 0.0
    %2022 = vmatpush1.msra.mxu0 0.0
    %2023 = vmatprep.subr.mxu0 0.0
    %2024 = vmatpush1.msra.mxu0 0.0
    %2025 = vmatprep.subr.mxu0 0.0
    %2026 = vmatpush1.msra.mxu0 0.0
    %2027 = vmatprep.subr.mxu0 0.0
    %2028 = vmatpush1.msra.mxu0 0.0
    %2029 = vmatprep.subr.mxu0 0.0
    %2030 = vmatpush1.msra.mxu0 0.0
    %2031 = vmatprep.subr.mxu0 0.0
    %2032 = vmatpush1.msra.mxu0 0.0
    %2033 = vmatprep.subr.mxu0 0.0
    %2034 = vmatpush1.msra.mxu0 0.0
    %2035 = vmatprep.mubr.f32.mxu0 0.0
    %v2036 = vand.u32 %v206, 4294901760
    %2037 = vmatmul.mubr.f32.gmra.mrb[0].mxu0 %v2036
    %v2038 = vpop.f32.mrb[0].mxu0
    %v2039 = vadd.f32 %v1766, %v2038
    %v2040 = vpop.f32.mrb[0].mxu0
    %2041 = vmatprep.mubr.f32.mxu0 0.0
    %v2042 = vand.u32 %v207, 4294901760
    %2043 = vmatmul.mubr.f32.gmra.mrb[0].mxu0 %v2042
    %v2044 = vpop.f32.mrb[0].mxu0
    %v2045 = vadd.f32 %v1772, %v2044
    %v2046 = vpop.f32.mrb[0].mxu0
    %2047 = vmatprep.mubr.f32.mxu0 0.0
    %v2048 = vand.u32 %v208, 4294901760
    %2049 = vmatmul.mubr.f32.gmra.mrb[0].mxu0 %v2048
    %v2050 = vpop.f32.mrb[0].mxu0
    %v2051 = vadd.f32 %v1778, %v2050
    %v2052 = vpop.f32.mrb[0].mxu0
    %2053 = vmatprep.mubr.f32.mxu0 0.0
    %v2054 = vand.u32 %v209, 4294901760
    %2055 = vmatmul.mubr.f32.gmra.mrb[0].mxu0 %v2054
    %v2056 = vpop.f32.mrb[0].mxu0
    %v2057 = vadd.f32 %v1784, %v2056
    %v2058 = vpop.f32.mrb[0].mxu0
    %2059 = vmatprep.mubr.f32.mxu0 0.0
    %v2060 = vand.u32 %v210, 4294901760
    %2061 = vmatmul.mubr.f32.gmra.mrb[0].mxu0 %v2060
    %v2062 = vpop.f32.mrb[0].mxu0
    %v2063 = vadd.f32 %v1790, %v2062
    %v2064 = vpop.f32.mrb[0].mxu0
    %2065 = vmatprep.mubr.f32.mxu0 0.0
    %v2066 = vand.u32 %v211, 4294901760
    %2067 = vmatmul.mubr.f32.gmra.mrb[0].mxu0 %v2066
    %v2068 = vpop.f32.mrb[0].mxu0
    %v2069 = vadd.f32 %v1796, %v2068
    %v2070 = vpop.f32.mrb[0].mxu0
    %2071 = vmatprep.mubr.f32.mxu0 0.0
    %v2072 = vand.u32 %v212, 4294901760
    %2073 = vmatmul.mubr.f32.gmra.mrb[0].mxu0 %v2072
    %v2074 = vpop.f32.mrb[0].mxu0
    %v2075 = vadd.f32 %v1802, %v2074
    %v2076 = vpop.f32.mrb[0].mxu0
    %2077 = vmatprep.mubr.f32.mxu0 0.0
    %v2078 = vand.u32 %v213, 4294901760
    %2079 = vmatmul.mubr.f32.gmra.mrb[0].mxu0 %v2078
    %v2080 = vpop.f32.mrb[0].mxu0
    %v2081 = vadd.f32 %v1808, %v2080
    %v2082 = vpop.f32.mrb[0].mxu0
    %2083 = vmatprep.mubr.f32.mxu0 0.0
    %v2084 = vand.u32 %v214, 4294901760
    %2085 = vmatmul.mubr.f32.gmra.mrb[0].mxu0 %v2084
    %v2086 = vpop.f32.mrb[0].mxu0
    %v2087 = vadd.f32 %v1814, %v2086
    %v2088 = vpop.f32.mrb[0].mxu0
    %2089 = vmatprep.mubr.f32.mxu0 0.0
    %v2090 = vand.u32 %v215, 4294901760
    %2091 = vmatmul.mubr.f32.gmra.mrb[0].mxu0 %v2090
    %v2092 = vpop.f32.mrb[0].mxu0
    %v2093 = vadd.f32 %v1820, %v2092
    %v2094 = vpop.f32.mrb[0].mxu0
    %2095 = vmatprep.mubr.f32.mxu0 0.0
    %v2096 = vand.u32 %v216, 4294901760
    %2097 = vmatmul.mubr.f32.gmra.mrb[0].mxu0 %v2096
    %v2098 = vpop.f32.mrb[0].mxu0
    %v2099 = vadd.f32 %v1826, %v2098
    %v2100 = vpop.f32.mrb[0].mxu0
    %2101 = vmatprep.mubr.f32.mxu0 0.0
    %v2102 = vand.u32 %v217, 4294901760
    %2103 = vmatmul.mubr.f32.gmra.mrb[0].mxu0 %v2102
    %v2104 = vpop.f32.mrb[0].mxu0
    %v2105 = vadd.f32 %v1832, %v2104
    %v2106 = vpop.f32.mrb[0].mxu0
    %2107 = vmatprep.mubr.f32.mxu0 0.0
    %v2108 = vand.u32 %v218, 4294901760
    %2109 = vmatmul.mubr.f32.gmra.mrb[0].mxu0 %v2108
    %v2110 = vpop.f32.mrb[0].mxu0
    %v2111 = vadd.f32 %v1838, %v2110
    %v2112 = vpop.f32.mrb[0].mxu0
    %2113 = vmatprep.mubr.f32.mxu0 0.0
    %v2114 = vand.u32 %v219, 4294901760
    %2115 = vmatmul.mubr.f32.gmra.mrb[0].mxu0 %v2114
    %v2116 = vpop.f32.mrb[0].mxu0
    %v2117 = vadd.f32 %v1844, %v2116
    %v2118 = vpop.f32.mrb[0].mxu0
    %2119 = vmatprep.mubr.f32.mxu0 0.0
    %v2120 = vand.u32 %v220, 4294901760
    %2121 = vmatmul.mubr.f32.gmra.mrb[0].mxu0 %v2120
    %v2122 = vpop.f32.mrb[0].mxu0
    %v2123 = vadd.f32 %v1850, %v2122
    %v2124 = vpop.f32.mrb[0].mxu0
    %2125 = vmatprep.mubr.f32.mxu0 0.0
    %v2126 = vand.u32 %v221, 4294901760
    %2127 = vmatmul.mubr.f32.gmra.mrb[0].mxu0 %v2126
    %v2128 = vpop.f32.mrb[0].mxu0
    %v2129 = vadd.f32 %v1856, %v2128
    %v2130 = vpop.f32.mrb[0].mxu0
    %2131 = vmatprep.mubr.f32.mxu0 0.0
    %v2132 = vand.u32 %v222, 4294901760
    %2133 = vmatmul.mubr.f32.gmra.mrb[0].mxu0 %v2132
    %v2134 = vpop.f32.mrb[0].mxu0
    %v2135 = vadd.f32 %v1862, %v2134
    %v2136 = vpop.f32.mrb[0].mxu0
    %2137 = vmatprep.mubr.f32.mxu0 0.0
    %v2138 = vand.u32 %v223, 4294901760
    %2139 = vmatmul.mubr.f32.gmra.mrb[0].mxu0 %v2138
    %v2140 = vpop.f32.mrb[0].mxu0
    %v2141 = vadd.f32 %v1868, %v2140
    %v2142 = vpop.f32.mrb[0].mxu0
    %2143 = vmatprep.mubr.f32.mxu0 0.0
    %v2144 = vand.u32 %v224, 4294901760
    %2145 = vmatmul.mubr.f32.gmra.mrb[0].mxu0 %v2144
    %v2146 = vpop.f32.mrb[0].mxu0
    %v2147 = vadd.f32 %v1874, %v2146
    %v2148 = vpop.f32.mrb[0].mxu0
    %2149 = vmatprep.mubr.f32.mxu0 0.0
    %v2150 = vand.u32 %v225, 4294901760
    %2151 = vmatmul.mubr.f32.gmra.mrb[0].mxu0 %v2150
    %v2152 = vpop.f32.mrb[0].mxu0
    %v2153 = vadd.f32 %v1880, %v2152
    %v2154 = vpop.f32.mrb[0].mxu0
    %2155 = vmatprep.mubr.f32.mxu0 0.0
    %v2156 = vand.u32 %v226, 4294901760
    %2157 = vmatmul.mubr.f32.gmra.mrb[0].mxu0 %v2156
    %v2158 = vpop.f32.mrb[0].mxu0
    %v2159 = vadd.f32 %v1886, %v2158
    %v2160 = vpop.f32.mrb[0].mxu0
    %2161 = vmatprep.mubr.f32.mxu0 0.0
    %v2162 = vand.u32 %v227, 4294901760
    %2163 = vmatmul.mubr.f32.gmra.mrb[0].mxu0 %v2162
    %v2164 = vpop.f32.mrb[0].mxu0
    %v2165 = vadd.f32 %v1892, %v2164
    %v2166 = vpop.f32.mrb[0].mxu0
    %2167 = vmatprep.mubr.f32.mxu0 0.0
    %v2168 = vand.u32 %v228, 4294901760
    %2169 = vmatmul.mubr.f32.gmra.mrb[0].mxu0 %v2168
    %v2170 = vpop.f32.mrb[0].mxu0
    %v2171 = vadd.f32 %v1898, %v2170
    %v2172 = vpop.f32.mrb[0].mxu0
    %2173 = vmatprep.mubr.f32.mxu0 0.0
    %v2174 = vand.u32 %v229, 4294901760
    %2175 = vmatmul.mubr.f32.gmra.mrb[0].mxu0 %v2174
    %v2176 = vpop.f32.mrb[0].mxu0
    %v2177 = vadd.f32 %v1904, %v2176
    %v2178 = vpop.f32.mrb[0].mxu0
    %2179 = vmatprep.mubr.f32.mxu0 0.0
    %v2180 = vand.u32 %v230, 4294901760
    %2181 = vmatmul.mubr.f32.gmra.mrb[0].mxu0 %v2180
    %v2182 = vpop.f32.mrb[0].mxu0
    %v2183 = vadd.f32 %v1910, %v2182
    %v2184 = vpop.f32.mrb[0].mxu0
    %2185 = vmatprep.mubr.f32.mxu0 0.0
    %v2186 = vand.u32 %v231, 4294901760
    %2187 = vmatmul.mubr.f32.gmra.mrb[0].mxu0 %v2186
    %v2188 = vpop.f32.mrb[0].mxu0
    %v2189 = vadd.f32 %v1916, %v2188
    %v2190 = vpop.f32.mrb[0].mxu0
    %2191 = vmatprep.mubr.f32.mxu0 0.0
    %v2192 = vand.u32 %v232, 4294901760
    %2193 = vmatmul.mubr.f32.gmra.mrb[0].mxu0 %v2192
    %v2194 = vpop.f32.mrb[0].mxu0
    %v2195 = vadd.f32 %v1922, %v2194
    %v2196 = vpop.f32.mrb[0].mxu0
    %2197 = vmatprep.mubr.f32.mxu0 0.0
    %v2198 = vand.u32 %v233, 4294901760
    %2199 = vmatmul.mubr.f32.gmra.mrb[0].mxu0 %v2198
    %v2200 = vpop.f32.mrb[0].mxu0
    %v2201 = vadd.f32 %v1928, %v2200
    %v2202 = vpop.f32.mrb[0].mxu0
    %2203 = vmatprep.mubr.f32.mxu0 0.0
    %v2204 = vand.u32 %v234, 4294901760
    %2205 = vmatmul.mubr.f32.gmra.mrb[0].mxu0 %v2204
    %v2206 = vpop.f32.mrb[0].mxu0
    %v2207 = vadd.f32 %v1934, %v2206
    %v2208 = vpop.f32.mrb[0].mxu0
    %2209 = vmatprep.mubr.f32.mxu0 0.0
    %v2210 = vand.u32 %v235, 4294901760
    %2211 = vmatmul.mubr.f32.gmra.mrb[0].mxu0 %v2210
    %v2212 = vpop.f32.mrb[0].mxu0
    %v2213 = vadd.f32 %v1940, %v2212
    %v2214 = vpop.f32.mrb[0].mxu0
    %2215 = vmatprep.mubr.f32.mxu0 0.0
    %v2216 = vand.u32 %v236, 4294901760
    %2217 = vmatmul.mubr.f32.gmra.mrb[0].mxu0 %v2216
    %v2218 = vpop.f32.mrb[0].mxu0
    %v2219 = vadd.f32 %v1946, %v2218
    %v2220 = vpop.f32.mrb[0].mxu0
    %2221 = vmatprep.mubr.f32.mxu0 0.0
    %v2222 = vand.u32 %v237, 4294901760
    %2223 = vmatmul.mubr.f32.gmra.mrb[0].mxu0 %v2222
    %v2224 = vpop.f32.mrb[0].mxu0
    %v2225 = vadd.f32 %v1952, %v2224
    %v2226 = vpop.f32.mrb[0].mxu0
    %2227 = vdwg.mxu0
    %v2228 = vlaneseq
    %v2229 = vshrl.u32 %v2228, 7
    %v2230 = vadd.s32 %v2229, 8
    %v2231 = vadd.s32 %v2229, 16
    %v2232 = vadd.s32 %v2229, 24
    %v2233 = vadd.s32 %v2229, 32
    %v2234 = vadd.s32 %v2229, 40
    %v2235 = vadd.s32 %v2229, 48
    %v2236 = vadd.s32 %v2229, 56
    %v2237 = vadd.s32 %v2229, 64
    %v2238 = vadd.s32 %v2229, 72
    %v2239 = vadd.s32 %v2229, 80
    %v2240 = vadd.s32 %v2229, 88
    %v2241 = vadd.s32 %v2229, 96
    %v2242 = vadd.s32 %v2229, 104
    %v2243 = vadd.s32 %v2229, 112
    %v2244 = vadd.s32 %v2229, 120
    %v2245 = vadd.s32 %v2229, 128
    %v2246 = vadd.s32 %v2229, 136
    %v2247 = vadd.s32 %v2229, 144
    %v2248 = vadd.s32 %v2229, 152
    %v2249 = vadd.s32 %v2229, 160
    %v2250 = vadd.s32 %v2229, 168
    %v2251 = vadd.s32 %v2229, 176
    %v2252 = vadd.s32 %v2229, 184
    %v2253 = vadd.s32 %v2229, 192
    %v2254 = vadd.s32 %v2229, 200
    %v2255 = vadd.s32 %v2229, 208
    %v2256 = vadd.s32 %v2229, 216
    %v2257 = vadd.s32 %v2229, 224
    %v2258 = vadd.s32 %v2229, 232
    %v2259 = vadd.s32 %v2229, 240
    %v2260 = vadd.s32 %v2229, 248
    %s2261 = smul.u32 0, 256
    %v2262 = vstv %s2261
    %v2263 = vadd.s32 %v2262, %v2229
    %v2264 = vadd.s32 %v2262, %v2230
    %v2265 = vadd.s32 %v2262, %v2231
    %v2266 = vadd.s32 %v2262, %v2232
    %v2267 = vadd.s32 %v2262, %v2233
    %v2268 = vadd.s32 %v2262, %v2234
    %v2269 = vadd.s32 %v2262, %v2235
    %v2270 = vadd.s32 %v2262, %v2236
    %v2271 = vadd.s32 %v2262, %v2237
    %v2272 = vadd.s32 %v2262, %v2238
    %v2273 = vadd.s32 %v2262, %v2239
    %v2274 = vadd.s32 %v2262, %v2240
    %v2275 = vadd.s32 %v2262, %v2241
    %v2276 = vadd.s32 %v2262, %v2242
    %v2277 = vadd.s32 %v2262, %v2243
    %v2278 = vadd.s32 %v2262, %v2244
    %v2279 = vadd.s32 %v2262, %v2245
    %v2280 = vadd.s32 %v2262, %v2246
    %v2281 = vadd.s32 %v2262, %v2247
    %v2282 = vadd.s32 %v2262, %v2248
    %v2283 = vadd.s32 %v2262, %v2249
    %v2284 = vadd.s32 %v2262, %v2250
    %v2285 = vadd.s32 %v2262, %v2251
    %v2286 = vadd.s32 %v2262, %v2252
    %v2287 = vadd.s32 %v2262, %v2253
    %v2288 = vadd.s32 %v2262, %v2254
    %v2289 = vadd.s32 %v2262, %v2255
    %v2290 = vadd.s32 %v2262, %v2256
    %v2291 = vadd.s32 %v2262, %v2257
    %v2292 = vadd.s32 %v2262, %v2258
    %v2293 = vadd.s32 %v2262, %v2259
    %v2294 = vadd.s32 %v2262, %v2260
    %v2295 = vmul.u32 %v2263, 128
    %v2296 = vmul.u32 %v2264, 128
    %v2297 = vmul.u32 %v2265, 128
    %v2298 = vmul.u32 %v2266, 128
    %v2299 = vmul.u32 %v2267, 128
    %v2300 = vmul.u32 %v2268, 128
    %v2301 = vmul.u32 %v2269, 128
    %v2302 = vmul.u32 %v2270, 128
    %v2303 = vmul.u32 %v2271, 128
    %v2304 = vmul.u32 %v2272, 128
    %v2305 = vmul.u32 %v2273, 128
    %v2306 = vmul.u32 %v2274, 128
    %v2307 = vmul.u32 %v2275, 128
    %v2308 = vmul.u32 %v2276, 128
    %v2309 = vmul.u32 %v2277, 128
    %v2310 = vmul.u32 %v2278, 128
    %v2311 = vmul.u32 %v2279, 128
    %v2312 = vmul.u32 %v2280, 128
    %v2313 = vmul.u32 %v2281, 128
    %v2314 = vmul.u32 %v2282, 128
    %v2315 = vmul.u32 %v2283, 128
    %v2316 = vmul.u32 %v2284, 128
    %v2317 = vmul.u32 %v2285, 128
    %v2318 = vmul.u32 %v2286, 128
    %v2319 = vmul.u32 %v2287, 128
    %v2320 = vmul.u32 %v2288, 128
    %v2321 = vmul.u32 %v2289, 128
    %v2322 = vmul.u32 %v2290, 128
    %v2323 = vmul.u32 %v2291, 128
    %v2324 = vmul.u32 %v2292, 128
    %v2325 = vmul.u32 %v2293, 128
    %v2326 = vmul.u32 %v2294, 128
    %v2327 = vadd.s32 %v2295, 1234
    %v2328 = vadd.s32 %v2296, 1234
    %v2329 = vadd.s32 %v2297, 1234
    %v2330 = vadd.s32 %v2298, 1234
    %v2331 = vadd.s32 %v2299, 1234
    %v2332 = vadd.s32 %v2300, 1234
    %v2333 = vadd.s32 %v2301, 1234
    %v2334 = vadd.s32 %v2302, 1234
    %v2335 = vadd.s32 %v2303, 1234
    %v2336 = vadd.s32 %v2304, 1234
    %v2337 = vadd.s32 %v2305, 1234
    %v2338 = vadd.s32 %v2306, 1234
    %v2339 = vadd.s32 %v2307, 1234
    %v2340 = vadd.s32 %v2308, 1234
    %v2341 = vadd.s32 %v2309, 1234
    %v2342 = vadd.s32 %v2310, 1234
    %v2343 = vadd.s32 %v2311, 1234
    %v2344 = vadd.s32 %v2312, 1234
    %v2345 = vadd.s32 %v2313, 1234
    %v2346 = vadd.s32 %v2314, 1234
    %v2347 = vadd.s32 %v2315, 1234
    %v2348 = vadd.s32 %v2316, 1234
    %v2349 = vadd.s32 %v2317, 1234
    %v2350 = vadd.s32 %v2318, 1234
    %v2351 = vadd.s32 %v2319, 1234
    %v2352 = vadd.s32 %v2320, 1234
    %v2353 = vadd.s32 %v2321, 1234
    %v2354 = vadd.s32 %v2322, 1234
    %v2355 = vadd.s32 %v2323, 1234
    %v2356 = vadd.s32 %v2324, 1234
    %v2357 = vadd.s32 %v2325, 1234
    %v2358 = vadd.s32 %v2326, 1234
    %v2359 = vadd.s32 %v2327, %v45
    %v2360 = vadd.s32 %v2328, %v45
    %v2361 = vadd.s32 %v2329, %v45
    %v2362 = vadd.s32 %v2330, %v45
    %v2363 = vadd.s32 %v2331, %v45
    %v2364 = vadd.s32 %v2332, %v45
    %v2365 = vadd.s32 %v2333, %v45
    %v2366 = vadd.s32 %v2334, %v45
    %v2367 = vadd.s32 %v2335, %v45
    %v2368 = vadd.s32 %v2336, %v45
    %v2369 = vadd.s32 %v2337, %v45
    %v2370 = vadd.s32 %v2338, %v45
    %v2371 = vadd.s32 %v2339, %v45
    %v2372 = vadd.s32 %v2340, %v45
    %v2373 = vadd.s32 %v2341, %v45
    %v2374 = vadd.s32 %v2342, %v45
    %v2375 = vadd.s32 %v2343, %v45
    %v2376 = vadd.s32 %v2344, %v45
    %v2377 = vadd.s32 %v2345, %v45
    %v2378 = vadd.s32 %v2346, %v45
    %v2379 = vadd.s32 %v2347, %v45
    %v2380 = vadd.s32 %v2348, %v45
    %v2381 = vadd.s32 %v2349, %v45
    %v2382 = vadd.s32 %v2350, %v45
    %v2383 = vadd.s32 %v2351, %v45
    %v2384 = vadd.s32 %v2352, %v45
    %v2385 = vadd.s32 %v2353, %v45
    %v2386 = vadd.s32 %v2354, %v45
    %v2387 = vadd.s32 %v2355, %v45
    %v2388 = vadd.s32 %v2356, %v45
    %v2389 = vadd.s32 %v2357, %v45
    %v2390 = vadd.s32 %v2358, %v45
    %v2391 = vshrl.u32 %v2359, 16
    %v2392 = vshrl.u32 %v2360, 16
    %v2393 = vshrl.u32 %v2361, 16
    %v2394 = vshrl.u32 %v2362, 16
    %v2395 = vshrl.u32 %v2363, 16
    %v2396 = vshrl.u32 %v2364, 16
    %v2397 = vshrl.u32 %v2365, 16
    %v2398 = vshrl.u32 %v2366, 16
    %v2399 = vshrl.u32 %v2367, 16
    %v2400 = vshrl.u32 %v2368, 16
    %v2401 = vshrl.u32 %v2369, 16
    %v2402 = vshrl.u32 %v2370, 16
    %v2403 = vshrl.u32 %v2371, 16
    %v2404 = vshrl.u32 %v2372, 16
    %v2405 = vshrl.u32 %v2373, 16
    %v2406 = vshrl.u32 %v2374, 16
    %v2407 = vshrl.u32 %v2375, 16
    %v2408 = vshrl.u32 %v2376, 16
    %v2409 = vshrl.u32 %v2377, 16
    %v2410 = vshrl.u32 %v2378, 16
    %v2411 = vshrl.u32 %v2379, 16
    %v2412 = vshrl.u32 %v2380, 16
    %v2413 = vshrl.u32 %v2381, 16
    %v2414 = vshrl.u32 %v2382, 16
    %v2415 = vshrl.u32 %v2383, 16
    %v2416 = vshrl.u32 %v2384, 16
    %v2417 = vshrl.u32 %v2385, 16
    %v2418 = vshrl.u32 %v2386, 16
    %v2419 = vshrl.u32 %v2387, 16
    %v2420 = vshrl.u32 %v2388, 16
    %v2421 = vshrl.u32 %v2389, 16
    %v2422 = vshrl.u32 %v2390, 16
    %v2423 = vxor.u32 %v2359, %v2391
    %v2424 = vxor.u32 %v2360, %v2392
    %v2425 = vxor.u32 %v2361, %v2393
    %v2426 = vxor.u32 %v2362, %v2394
    %v2427 = vxor.u32 %v2363, %v2395
    %v2428 = vxor.u32 %v2364, %v2396
    %v2429 = vxor.u32 %v2365, %v2397
    %v2430 = vxor.u32 %v2366, %v2398
    %v2431 = vxor.u32 %v2367, %v2399
    %v2432 = vxor.u32 %v2368, %v2400
    %v2433 = vxor.u32 %v2369, %v2401
    %v2434 = vxor.u32 %v2370, %v2402
    %v2435 = vxor.u32 %v2371, %v2403
    %v2436 = vxor.u32 %v2372, %v2404
    %v2437 = vxor.u32 %v2373, %v2405
    %v2438 = vxor.u32 %v2374, %v2406
    %v2439 = vxor.u32 %v2375, %v2407
    %v2440 = vxor.u32 %v2376, %v2408
    %v2441 = vxor.u32 %v2377, %v2409
    %v2442 = vxor.u32 %v2378, %v2410
    %v2443 = vxor.u32 %v2379, %v2411
    %v2444 = vxor.u32 %v2380, %v2412
    %v2445 = vxor.u32 %v2381, %v2413
    %v2446 = vxor.u32 %v2382, %v2414
    %v2447 = vxor.u32 %v2383, %v2415
    %v2448 = vxor.u32 %v2384, %v2416
    %v2449 = vxor.u32 %v2385, %v2417
    %v2450 = vxor.u32 %v2386, %v2418
    %v2451 = vxor.u32 %v2387, %v2419
    %v2452 = vxor.u32 %v2388, %v2420
    %v2453 = vxor.u32 %v2389, %v2421
    %v2454 = vxor.u32 %v2390, %v2422
    %v2455 = vmul.u32 %v2423, 2146121005
    %v2456 = vmul.u32 %v2424, 2146121005
    %v2457 = vmul.u32 %v2425, 2146121005
    %v2458 = vmul.u32 %v2426, 2146121005
    %v2459 = vmul.u32 %v2427, 2146121005
    %v2460 = vmul.u32 %v2428, 2146121005
    %v2461 = vmul.u32 %v2429, 2146121005
    %v2462 = vmul.u32 %v2430, 2146121005
    %v2463 = vmul.u32 %v2431, 2146121005
    %v2464 = vmul.u32 %v2432, 2146121005
    %v2465 = vmul.u32 %v2433, 2146121005
    %v2466 = vmul.u32 %v2434, 2146121005
    %v2467 = vmul.u32 %v2435, 2146121005
    %v2468 = vmul.u32 %v2436, 2146121005
    %v2469 = vmul.u32 %v2437, 2146121005
    %v2470 = vmul.u32 %v2438, 2146121005
    %v2471 = vmul.u32 %v2439, 2146121005
    %v2472 = vmul.u32 %v2440, 2146121005
    %v2473 = vmul.u32 %v2441, 2146121005
    %v2474 = vmul.u32 %v2442, 2146121005
    %v2475 = vmul.u32 %v2443, 2146121005
    %v2476 = vmul.u32 %v2444, 2146121005
    %v2477 = vmul.u32 %v2445, 2146121005
    %v2478 = vmul.u32 %v2446, 2146121005
    %v2479 = vmul.u32 %v2447, 2146121005
    %v2480 = vmul.u32 %v2448, 2146121005
    %v2481 = vmul.u32 %v2449, 2146121005
    %v2482 = vmul.u32 %v2450, 2146121005
    %v2483 = vmul.u32 %v2451, 2146121005
    %v2484 = vmul.u32 %v2452, 2146121005
    %v2485 = vmul.u32 %v2453, 2146121005
    %v2486 = vmul.u32 %v2454, 2146121005
    %v2487 = vshrl.u32 %v2455, 15
    %v2488 = vshrl.u32 %v2456, 15
    %v2489 = vshrl.u32 %v2457, 15
    %v2490 = vshrl.u32 %v2458, 15
    %v2491 = vshrl.u32 %v2459, 15
    %v2492 = vshrl.u32 %v2460, 15
    %v2493 = vshrl.u32 %v2461, 15
    %v2494 = vshrl.u32 %v2462, 15
    %v2495 = vshrl.u32 %v2463, 15
    %v2496 = vshrl.u32 %v2464, 15
    %v2497 = vshrl.u32 %v2465, 15
    %v2498 = vshrl.u32 %v2466, 15
    %v2499 = vshrl.u32 %v2467, 15
    %v2500 = vshrl.u32 %v2468, 15
    %v2501 = vshrl.u32 %v2469, 15
    %v2502 = vshrl.u32 %v2470, 15
    %v2503 = vshrl.u32 %v2471, 15
    %v2504 = vshrl.u32 %v2472, 15
    %v2505 = vshrl.u32 %v2473, 15
    %v2506 = vshrl.u32 %v2474, 15
    %v2507 = vshrl.u32 %v2475, 15
    %v2508 = vshrl.u32 %v2476, 15
    %v2509 = vshrl.u32 %v2477, 15
    %v2510 = vshrl.u32 %v2478, 15
    %v2511 = vshrl.u32 %v2479, 15
    %v2512 = vshrl.u32 %v2480, 15
    %v2513 = vshrl.u32 %v2481, 15
    %v2514 = vshrl.u32 %v2482, 15
    %v2515 = vshrl.u32 %v2483, 15
    %v2516 = vshrl.u32 %v2484, 15
    %v2517 = vshrl.u32 %v2485, 15
    %v2518 = vshrl.u32 %v2486, 15
    %v2519 = vxor.u32 %v2455, %v2487
    %v2520 = vxor.u32 %v2456, %v2488
    %v2521 = vxor.u32 %v2457, %v2489
    %v2522 = vxor.u32 %v2458, %v2490
    %v2523 = vxor.u32 %v2459, %v2491
    %v2524 = vxor.u32 %v2460, %v2492
    %v2525 = vxor.u32 %v2461, %v2493
    %v2526 = vxor.u32 %v2462, %v2494
    %v2527 = vxor.u32 %v2463, %v2495
    %v2528 = vxor.u32 %v2464, %v2496
    %v2529 = vxor.u32 %v2465, %v2497
    %v2530 = vxor.u32 %v2466, %v2498
    %v2531 = vxor.u32 %v2467, %v2499
    %v2532 = vxor.u32 %v2468, %v2500
    %v2533 = vxor.u32 %v2469, %v2501
    %v2534 = vxor.u32 %v2470, %v2502
    %v2535 = vxor.u32 %v2471, %v2503
    %v2536 = vxor.u32 %v2472, %v2504
    %v2537 = vxor.u32 %v2473, %v2505
    %v2538 = vxor.u32 %v2474, %v2506
    %v2539 = vxor.u32 %v2475, %v2507
    %v2540 = vxor.u32 %v2476, %v2508
    %v2541 = vxor.u32 %v2477, %v2509
    %v2542 = vxor.u32 %v2478, %v2510
    %v2543 = vxor.u32 %v2479, %v2511
    %v2544 = vxor.u32 %v2480, %v2512
    %v2545 = vxor.u32 %v2481, %v2513
    %v2546 = vxor.u32 %v2482, %v2514
    %v2547 = vxor.u32 %v2483, %v2515
    %v2548 = vxor.u32 %v2484, %v2516
    %v2549 = vxor.u32 %v2485, %v2517
    %v2550 = vxor.u32 %v2486, %v2518
    %v2551 = vmul.u32 %v2519, 2221713035
    %v2552 = vmul.u32 %v2520, 2221713035
    %v2553 = vmul.u32 %v2521, 2221713035
    %v2554 = vmul.u32 %v2522, 2221713035
    %v2555 = vmul.u32 %v2523, 2221713035
    %v2556 = vmul.u32 %v2524, 2221713035
    %v2557 = vmul.u32 %v2525, 2221713035
    %v2558 = vmul.u32 %v2526, 2221713035
    %v2559 = vmul.u32 %v2527, 2221713035
    %v2560 = vmul.u32 %v2528, 2221713035
    %v2561 = vmul.u32 %v2529, 2221713035
    %v2562 = vmul.u32 %v2530, 2221713035
    %v2563 = vmul.u32 %v2531, 2221713035
    %v2564 = vmul.u32 %v2532, 2221713035
    %v2565 = vmul.u32 %v2533, 2221713035
    %v2566 = vmul.u32 %v2534, 2221713035
    %v2567 = vmul.u32 %v2535, 2221713035
    %v2568 = vmul.u32 %v2536, 2221713035
    %v2569 = vmul.u32 %v2537, 2221713035
    %v2570 = vmul.u32 %v2538, 2221713035
    %v2571 = vmul.u32 %v2539, 2221713035
    %v2572 = vmul.u32 %v2540, 2221713035
    %v2573 = vmul.u32 %v2541, 2221713035
    %v2574 = vmul.u32 %v2542, 2221713035
    %v2575 = vmul.u32 %v2543, 2221713035
    %v2576 = vmul.u32 %v2544, 2221713035
    %v2577 = vmul.u32 %v2545, 2221713035
    %v2578 = vmul.u32 %v2546, 2221713035
    %v2579 = vmul.u32 %v2547, 2221713035
    %v2580 = vmul.u32 %v2548, 2221713035
    %v2581 = vmul.u32 %v2549, 2221713035
    %v2582 = vmul.u32 %v2550, 2221713035
    %v2583 = vshrl.u32 %v2551, 16
    %v2584 = vshrl.u32 %v2552, 16
    %v2585 = vshrl.u32 %v2553, 16
    %v2586 = vshrl.u32 %v2554, 16
    %v2587 = vshrl.u32 %v2555, 16
    %v2588 = vshrl.u32 %v2556, 16
    %v2589 = vshrl.u32 %v2557, 16
    %v2590 = vshrl.u32 %v2558, 16
    %v2591 = vshrl.u32 %v2559, 16
    %v2592 = vshrl.u32 %v2560, 16
    %v2593 = vshrl.u32 %v2561, 16
    %v2594 = vshrl.u32 %v2562, 16
    %v2595 = vshrl.u32 %v2563, 16
    %v2596 = vshrl.u32 %v2564, 16
    %v2597 = vshrl.u32 %v2565, 16
    %v2598 = vshrl.u32 %v2566, 16
    %v2599 = vshrl.u32 %v2567, 16
    %v2600 = vshrl.u32 %v2568, 16
    %v2601 = vshrl.u32 %v2569, 16
    %v2602 = vshrl.u32 %v2570, 16
    %v2603 = vshrl.u32 %v2571, 16
    %v2604 = vshrl.u32 %v2572, 16
    %v2605 = vshrl.u32 %v2573, 16
    %v2606 = vshrl.u32 %v2574, 16
    %v2607 = vshrl.u32 %v2575, 16
    %v2608 = vshrl.u32 %v2576, 16
    %v2609 = vshrl.u32 %v2577, 16
    %v2610 = vshrl.u32 %v2578, 16
    %v2611 = vshrl.u32 %v2579, 16
    %v2612 = vshrl.u32 %v2580, 16
    %v2613 = vshrl.u32 %v2581, 16
    %v2614 = vshrl.u32 %v2582, 16
    %v2615 = vxor.u32 %v2551, %v2583
    %v2616 = vxor.u32 %v2552, %v2584
    %v2617 = vxor.u32 %v2553, %v2585
    %v2618 = vxor.u32 %v2554, %v2586
    %v2619 = vxor.u32 %v2555, %v2587
    %v2620 = vxor.u32 %v2556, %v2588
    %v2621 = vxor.u32 %v2557, %v2589
    %v2622 = vxor.u32 %v2558, %v2590
    %v2623 = vxor.u32 %v2559, %v2591
    %v2624 = vxor.u32 %v2560, %v2592
    %v2625 = vxor.u32 %v2561, %v2593
    %v2626 = vxor.u32 %v2562, %v2594
    %v2627 = vxor.u32 %v2563, %v2595
    %v2628 = vxor.u32 %v2564, %v2596
    %v2629 = vxor.u32 %v2565, %v2597
    %v2630 = vxor.u32 %v2566, %v2598
    %v2631 = vxor.u32 %v2567, %v2599
    %v2632 = vxor.u32 %v2568, %v2600
    %v2633 = vxor.u32 %v2569, %v2601
    %v2634 = vxor.u32 %v2570, %v2602
    %v2635 = vxor.u32 %v2571, %v2603
    %v2636 = vxor.u32 %v2572, %v2604
    %v2637 = vxor.u32 %v2573, %v2605
    %v2638 = vxor.u32 %v2574, %v2606
    %v2639 = vxor.u32 %v2575, %v2607
    %v2640 = vxor.u32 %v2576, %v2608
    %v2641 = vxor.u32 %v2577, %v2609
    %v2642 = vxor.u32 %v2578, %v2610
    %v2643 = vxor.u32 %v2579, %v2611
    %v2644 = vxor.u32 %v2580, %v2612
    %v2645 = vxor.u32 %v2581, %v2613
    %v2646 = vxor.u32 %v2582, %v2614
    %v2647 = vshrl.u32 %v2615, 8
    %v2648 = vshrl.u32 %v2616, 8
    %v2649 = vshrl.u32 %v2617, 8
    %v2650 = vshrl.u32 %v2618, 8
    %v2651 = vshrl.u32 %v2619, 8
    %v2652 = vshrl.u32 %v2620, 8
    %v2653 = vshrl.u32 %v2621, 8
    %v2654 = vshrl.u32 %v2622, 8
    %v2655 = vshrl.u32 %v2623, 8
    %v2656 = vshrl.u32 %v2624, 8
    %v2657 = vshrl.u32 %v2625, 8
    %v2658 = vshrl.u32 %v2626, 8
    %v2659 = vshrl.u32 %v2627, 8
    %v2660 = vshrl.u32 %v2628, 8
    %v2661 = vshrl.u32 %v2629, 8
    %v2662 = vshrl.u32 %v2630, 8
    %v2663 = vshrl.u32 %v2631, 8
    %v2664 = vshrl.u32 %v2632, 8
    %v2665 = vshrl.u32 %v2633, 8
    %v2666 = vshrl.u32 %v2634, 8
    %v2667 = vshrl.u32 %v2635, 8
    %v2668 = vshrl.u32 %v2636, 8
    %v2669 = vshrl.u32 %v2637, 8
    %v2670 = vshrl.u32 %v2638, 8
    %v2671 = vshrl.u32 %v2639, 8
    %v2672 = vshrl.u32 %v2640, 8
    %v2673 = vshrl.u32 %v2641, 8
    %v2674 = vshrl.u32 %v2642, 8
    %v2675 = vshrl.u32 %v2643, 8
    %v2676 = vshrl.u32 %v2644, 8
    %v2677 = vshrl.u32 %v2645, 8
    %v2678 = vshrl.u32 %v2646, 8
    %vm2679 = vcmp.ge.s32.totalorder %v2647, 3355443
    %vm2680 = vcmp.ge.s32.totalorder %v2648, 3355443
    %vm2681 = vcmp.ge.s32.totalorder %v2649, 3355443
    %vm2682 = vcmp.ge.s32.totalorder %v2650, 3355443
    %vm2683 = vcmp.ge.s32.totalorder %v2651, 3355443
    %vm2684 = vcmp.ge.s32.totalorder %v2652, 3355443
    %vm2685 = vcmp.ge.s32.totalorder %v2653, 3355443
    %vm2686 = vcmp.ge.s32.totalorder %v2654, 3355443
    %vm2687 = vcmp.ge.s32.totalorder %v2655, 3355443
    %vm2688 = vcmp.ge.s32.totalorder %v2656, 3355443
    %vm2689 = vcmp.ge.s32.totalorder %v2657, 3355443
    %vm2690 = vcmp.ge.s32.totalorder %v2658, 3355443
    %vm2691 = vcmp.ge.s32.totalorder %v2659, 3355443
    %vm2692 = vcmp.ge.s32.totalorder %v2660, 3355443
    %vm2693 = vcmp.ge.s32.totalorder %v2661, 3355443
    %vm2694 = vcmp.ge.s32.totalorder %v2662, 3355443
    %vm2695 = vcmp.ge.s32.totalorder %v2663, 3355443
    %vm2696 = vcmp.ge.s32.totalorder %v2664, 3355443
    %vm2697 = vcmp.ge.s32.totalorder %v2665, 3355443
    %vm2698 = vcmp.ge.s32.totalorder %v2666, 3355443
    %vm2699 = vcmp.ge.s32.totalorder %v2667, 3355443
    %vm2700 = vcmp.ge.s32.totalorder %v2668, 3355443
    %vm2701 = vcmp.ge.s32.totalorder %v2669, 3355443
    %vm2702 = vcmp.ge.s32.totalorder %v2670, 3355443
    %vm2703 = vcmp.ge.s32.totalorder %v2671, 3355443
    %vm2704 = vcmp.ge.s32.totalorder %v2672, 3355443
    %vm2705 = vcmp.ge.s32.totalorder %v2673, 3355443
    %vm2706 = vcmp.ge.s32.totalorder %v2674, 3355443
    %vm2707 = vcmp.ge.s32.totalorder %v2675, 3355443
    %vm2708 = vcmp.ge.s32.totalorder %v2676, 3355443
    %vm2709 = vcmp.ge.s32.totalorder %v2677, 3355443
    %vm2710 = vcmp.ge.s32.totalorder %v2678, 3355443
    %v2711 = vsel %vm2679, 1.25, 0.0
    %v2712 = vsel %vm2680, 1.25, 0.0
    %v2713 = vsel %vm2681, 1.25, 0.0
    %v2714 = vsel %vm2682, 1.25, 0.0
    %v2715 = vsel %vm2683, 1.25, 0.0
    %v2716 = vsel %vm2684, 1.25, 0.0
    %v2717 = vsel %vm2685, 1.25, 0.0
    %v2718 = vsel %vm2686, 1.25, 0.0
    %v2719 = vsel %vm2687, 1.25, 0.0
    %v2720 = vsel %vm2688, 1.25, 0.0
    %v2721 = vsel %vm2689, 1.25, 0.0
    %v2722 = vsel %vm2690, 1.25, 0.0
    %v2723 = vsel %vm2691, 1.25, 0.0
    %v2724 = vsel %vm2692, 1.25, 0.0
    %v2725 = vsel %vm2693, 1.25, 0.0
    %v2726 = vsel %vm2694, 1.25, 0.0
    %v2727 = vsel %vm2695, 1.25, 0.0
    %v2728 = vsel %vm2696, 1.25, 0.0
    %v2729 = vsel %vm2697, 1.25, 0.0
    %v2730 = vsel %vm2698, 1.25, 0.0
    %v2731 = vsel %vm2699, 1.25, 0.0
    %v2732 = vsel %vm2700, 1.25, 0.0
    %v2733 = vsel %vm2701, 1.25, 0.0
    %v2734 = vsel %vm2702, 1.25, 0.0
    %v2735 = vsel %vm2703, 1.25, 0.0
    %v2736 = vsel %vm2704, 1.25, 0.0
    %v2737 = vsel %vm2705, 1.25, 0.0
    %v2738 = vsel %vm2706, 1.25, 0.0
    %v2739 = vsel %vm2707, 1.25, 0.0
    %v2740 = vsel %vm2708, 1.25, 0.0
    %v2741 = vsel %vm2709, 1.25, 0.0
    %v2742 = vsel %vm2710, 1.25, 0.0
    %v2743 = vmul.f32 %v2039, %v2711
    %v2744 = vmul.f32 %v2045, %v2712
    %v2745 = vmul.f32 %v2051, %v2713
    %v2746 = vmul.f32 %v2057, %v2714
    %v2747 = vmul.f32 %v2063, %v2715
    %v2748 = vmul.f32 %v2069, %v2716
    %v2749 = vmul.f32 %v2075, %v2717
    %v2750 = vmul.f32 %v2081, %v2718
    %v2751 = vmul.f32 %v2087, %v2719
    %v2752 = vmul.f32 %v2093, %v2720
    %v2753 = vmul.f32 %v2099, %v2721
    %v2754 = vmul.f32 %v2105, %v2722
    %v2755 = vmul.f32 %v2111, %v2723
    %v2756 = vmul.f32 %v2117, %v2724
    %v2757 = vmul.f32 %v2123, %v2725
    %v2758 = vmul.f32 %v2129, %v2726
    %v2759 = vmul.f32 %v2135, %v2727
    %v2760 = vmul.f32 %v2141, %v2728
    %v2761 = vmul.f32 %v2147, %v2729
    %v2762 = vmul.f32 %v2153, %v2730
    %v2763 = vmul.f32 %v2159, %v2731
    %v2764 = vmul.f32 %v2165, %v2732
    %v2765 = vmul.f32 %v2171, %v2733
    %v2766 = vmul.f32 %v2177, %v2734
    %v2767 = vmul.f32 %v2183, %v2735
    %v2768 = vmul.f32 %v2189, %v2736
    %v2769 = vmul.f32 %v2195, %v2737
    %v2770 = vmul.f32 %v2201, %v2738
    %v2771 = vmul.f32 %v2207, %v2739
    %v2772 = vmul.f32 %v2213, %v2740
    %v2773 = vmul.f32 %v2219, %v2741
    %v2774 = vmul.f32 %v2225, %v2742
    %2775 = vst [vmem:[#allocation2] sm:$0xff] %v2743
    %2776 = vst [vmem:[#allocation2 + $0x8] sm:$0xff] %v2744
    %2777 = vst [vmem:[#allocation2 + $0x10] sm:$0xff] %v2745
    %2778 = vst [vmem:[#allocation2 + $0x18] sm:$0xff] %v2746
    %2779 = vst [vmem:[#allocation2 + $0x20] sm:$0xff] %v2747
    %2780 = vst [vmem:[#allocation2 + $0x28] sm:$0xff] %v2748
    %2781 = vst [vmem:[#allocation2 + $0x30] sm:$0xff] %v2749
    %2782 = vst [vmem:[#allocation2 + $0x38] sm:$0xff] %v2750
    %2783 = vst [vmem:[#allocation2 + $0x40] sm:$0xff] %v2751
    %2784 = vst [vmem:[#allocation2 + $0x48] sm:$0xff] %v2752
    %2785 = vst [vmem:[#allocation2 + $0x50] sm:$0xff] %v2753
    %2786 = vst [vmem:[#allocation2 + $0x58] sm:$0xff] %v2754
    %2787 = vst [vmem:[#allocation2 + $0x60] sm:$0xff] %v2755
    %2788 = vst [vmem:[#allocation2 + $0x68] sm:$0xff] %v2756
    %2789 = vst [vmem:[#allocation2 + $0x70] sm:$0xff] %v2757
    %2790 = vst [vmem:[#allocation2 + $0x78] sm:$0xff] %v2758
    %2791 = vst [vmem:[#allocation2 + $0x80] sm:$0xff] %v2759
    %2792 = vst [vmem:[#allocation2 + $0x88] sm:$0xff] %v2760
    %2793 = vst [vmem:[#allocation2 + $0x90] sm:$0xff] %v2761
    %2794 = vst [vmem:[#allocation2 + $0x98] sm:$0xff] %v2762
    %2795 = vst [vmem:[#allocation2 + $0xa0] sm:$0xff] %v2763
    %2796 = vst [vmem:[#allocation2 + $0xa8] sm:$0xff] %v2764
    %2797 = vst [vmem:[#allocation2 + $0xb0] sm:$0xff] %v2765
    %2798 = vst [vmem:[#allocation2 + $0xb8] sm:$0xff] %v2766
    %2799 = vst [vmem:[#allocation2 + $0xc0] sm:$0xff] %v2767
    %2800 = vst [vmem:[#allocation2 + $0xc8] sm:$0xff] %v2768
    %2801 = vst [vmem:[#allocation2 + $0xd0] sm:$0xff] %v2769
    %2802 = vst [vmem:[#allocation2 + $0xd8] sm:$0xff] %v2770
    %2803 = vst [vmem:[#allocation2 + $0xe0] sm:$0xff] %v2771
    %2804 = vst [vmem:[#allocation2 + $0xe8] sm:$0xff] %v2772
    %2805 = vst [vmem:[#allocation2 + $0xf0] sm:$0xff] %v2773
    %2806 = vst [vmem:[#allocation2 + $0xf8] sm:$0xff] %v2774
    // Predicated region
    $region10: #{tpu_custom_call.1} parent=1 // pred_check
      _
    $region11: #{tpu_custom_call.1} parent=1 // pred_check_branch
      %2808 = sbr.rel (0) target = $region13
    $region12: #{tpu_custom_call.1} parent=1 // pred_region
      %s2810 = ssub.s32 4096, 4096
      %2811 = vsyncadd [#allocation3], %s2810
      %s2812 = sshll.u32 [#allocation2], 4
      %s2813 = int_to_ptr.vmem [resolvable:$true] %s2812
      %2818 = dma.vmem_to_hbm [thread:$0]  %s2813, 4096, %s2, [#allocation3], 128, 128, 8
    $region13: #{tpu_custom_call.1} parent=1 // pred_fallthru
      _
    // Predicated region
    $region14: #{tpu_custom_call.1} parent=1 // pred_check
      _
    $region15: #{tpu_custom_call.1} parent=1 // pred_check_branch
      %2820 = sbr.rel (0) target = $region17
    $region16: #{tpu_custom_call.1} parent=1 // pred_region
      %2821 = dma.done [#allocation3], 4096
    $region17: #{tpu_custom_call.1} parent=1 // pred_fallthru
      _
    %2822 = vsyncpa [#allocation3], 1

</llo_original>
